<compile_context>
chip_gen: v7x
topology: tpu7x:2x2x1
jax: 0.10.0
libtpu: 0.0.40
codegen_flags: <defaults>
</compile_context>

<pallas_src>
import math

import jax
import jax.numpy as jnp
from jax import lax
from jax.experimental import pallas as pl
from jax.experimental.pallas import tpu as pltpu

# ---------------------------------------------------------------------------
# model dimensions (small, synthetic)
# ---------------------------------------------------------------------------
B = 2            # batch
S = 8            # seq_len
D = 32           # d_model
H = 4            # num heads
DH = D // H      # head dim
F = 4 * D        # feed-forward hidden dim
EPS = 1e-5
NEG_INF = -1e30


def _layer_norm(x, gamma, beta):
    mu = jnp.mean(x, axis=-1, keepdims=True)
    var = jnp.mean((x - mu) ** 2, axis=-1, keepdims=True)
    return (x - mu) * lax.rsqrt(var + EPS) * gamma + beta


def _gelu(x):
    # tanh approximation of GELU (EUP handles tanh; VPU handles the rest)
    c = math.sqrt(2.0 / math.pi)
    return 0.5 * x * (1.0 + jnp.tanh(c * (x + 0.044715 * x * x * x)))


def block_kernel(
    x_ref, mask_ref,
    ln1_g_ref, ln1_b_ref,
    wqkv_ref, bqkv_ref, wo_ref, bo_ref,
    ln2_g_ref, ln2_b_ref,
    w1_ref, b1_ref, w2_ref, b2_ref,
    o_ref,
):
    # one batch element per grid step
    x = x_ref[0]                                   # (S, D)

    # ---------------- LayerNorm 1 ----------------
    nx = _layer_norm(x, ln1_g_ref[...], ln1_b_ref[...])

    # ---------------- Fused QKV projection ----------------
    # 1/sqrt(DH) is pre-folded into the Q columns of wqkv/bqkv at trace time.
    qkv = jnp.dot(nx, wqkv_ref[...],
                  preferred_element_type=jnp.float32) + bqkv_ref[...]   # (S, 3D)
    q = qkv[:, 0 * D:1 * D]
    k = qkv[:, 1 * D:2 * D]
    v = qkv[:, 2 * D:3 * D]

    # additive causal mask, precomputed on host: 0 where allowed, -1e30 elsewhere
    mask_bias = mask_ref[...]                      # (S, S)

    # ---------------- Multi-head attention ----------------
    # NOTE(scale-up): for D >= 128 replace this unrolled loop with a single
    # batched contraction; at this toy size it lowers to the same MXU pushes.
    z_heads = []
    for h in range(H):                             # static unrolled head loop
        qh = q[:, h * DH:(h + 1) * DH]             # (S, DH)
        kh = k[:, h * DH:(h + 1) * DH]
        vh = v[:, h * DH:(h + 1) * DH]
        s = jnp.dot(qh, kh.T, preferred_element_type=jnp.float32) + mask_bias
        m = jnp.max(s, axis=-1, keepdims=True)
        e = jnp.exp(s - m)
        p = e * pl.reciprocal(jnp.sum(e, axis=-1, keepdims=True), approx=True)
        z_heads.append(jnp.dot(p, vh, preferred_element_type=jnp.float32))
    z = jnp.concatenate(z_heads, axis=-1)          # (S, D)

    attn_out = jnp.dot(z, wo_ref[...],
                       preferred_element_type=jnp.float32) + bo_ref[...]

    resid_mid = x + attn_out

    # ---------------- LayerNorm 2 ----------------
    n2 = _layer_norm(resid_mid, ln2_g_ref[...], ln2_b_ref[...])

    # ---------------- Feed-forward ----------------
    h1 = jnp.dot(n2, w1_ref[...],
                 preferred_element_type=jnp.float32) + b1_ref[...]
    h1 = _gelu(h1)
    ff = jnp.dot(h1, w2_ref[...],
                 preferred_element_type=jnp.float32) + b2_ref[...]

    # TODO(synk): with D=32 this is a masked (32/128-lane) store; it becomes a
    # full unmasked vst at real model sizes (D >= 128).
    o_ref[0] = resid_mid + ff


def transformer_block(x, params):
    """x: (B, S, D) float32.  params: dict of weights (see init_params)."""
    # --- trace-time fusion: QKV weights/biases + folded attention scale ---
    scale = 1.0 / math.sqrt(DH)
    wqkv = jnp.concatenate(
        [params["wq"] * scale, params["wk"], params["wv"]], axis=1)   # (D, 3D)
    bqkv = jnp.concatenate(
        [params["bq"] * scale, params["bk"], params["bv"]], axis=1)   # (1, 3D)

    # --- trace-time additive causal mask ---
    row = lax.broadcasted_iota(jnp.int32, (S, S), 0)
    col = lax.broadcasted_iota(jnp.int32, (S, S), 1)
    mask_bias = jnp.where(col <= row, 0.0, NEG_INF).astype(jnp.float32)

    def full_spec(shape):
        # full-array block; constant index_map keeps it VMEM-resident across
        # grid steps (weights are never re-fetched per batch element).
        zeros = (0,) * len(shape)
        return pl.BlockSpec(shape, lambda b, _z=zeros: _z)

    in_specs = [
        pl.BlockSpec((1, S, D), lambda b: (b, 0, 0)),      # x: one batch slice
        full_spec((S, S)),                                 # additive causal mask
        full_spec((1, D)), full_spec((1, D)),              # ln1 gamma/beta
        full_spec((D, 3 * D)), full_spec((1, 3 * D)),      # fused Wqkv, bqkv
        full_spec((D, D)), full_spec((1, D)),              # Wo, bo
        full_spec((1, D)), full_spec((1, D)),              # ln2 gamma/beta
        full_spec((D, F)), full_spec((1, F)),              # W1, b1
        full_spec((F, D)), full_spec((1, D)),              # W2, b2
    ]

    args = (
        x, mask_bias,
        params["ln1_g"], params["ln1_b"],
        wqkv, bqkv, params["wo"], params["bo"],
        params["ln2_g"], params["ln2_b"],
        params["w1"], params["b1"], params["w2"], params["b2"],
    )

    return pl.pallas_call(
        block_kernel,
        out_shape=jax.ShapeDtypeStruct((B, S, D), jnp.float32),
        grid_spec=pltpu.PrefetchScalarGridSpec(
            num_scalar_prefetch=0,
            grid=(B,),                      # one batch per step; "parallel" lets
            in_specs=in_specs,              # v7x split the two steps across TCs
            out_specs=pl.BlockSpec((1, S, D), lambda b: (b, 0, 0)),
        ),
        compiler_params=pltpu.CompilerParams(
            dimension_semantics=("parallel",),
        ),
    )(*args)


def init_params(key):
    ks = jax.random.split(key, 8)
    std = 0.02
    p = {
        "ln1_g": jnp.ones((1, D), jnp.float32),
        "ln1_b": jnp.zeros((1, D), jnp.float32),
        "wq": std * jax.random.normal(ks[0], (D, D), jnp.float32),
        "bq": jnp.zeros((1, D), jnp.float32),
        "wk": std * jax.random.normal(ks[1], (D, D), jnp.float32),
        "bk": jnp.zeros((1, D), jnp.float32),
        "wv": std * jax.random.normal(ks[2], (D, D), jnp.float32),
        "bv": jnp.zeros((1, D), jnp.float32),
        "wo": std * jax.random.normal(ks[3], (D, D), jnp.float32),
        "bo": jnp.zeros((1, D), jnp.float32),
        "ln2_g": jnp.ones((1, D), jnp.float32),
        "ln2_b": jnp.zeros((1, D), jnp.float32),
        "w1": std * jax.random.normal(ks[4], (D, F), jnp.float32),
        "b1": jnp.zeros((1, F), jnp.float32),
        "w2": std * jax.random.normal(ks[5], (F, D), jnp.float32),
        "b2": jnp.zeros((1, D), jnp.float32),
    }
    return p


def reference_block(x, p):
    """Plain-JAX reference of the same forward pass (for a sanity check)."""
    def ln(x, g, b):
        mu = jnp.mean(x, axis=-1, keepdims=True)
        var = jnp.mean((x - mu) ** 2, axis=-1, keepdims=True)
        return (x - mu) / jnp.sqrt(var + EPS) * g + b

    nx = ln(x, p["ln1_g"], p["ln1_b"])
    q = nx @ p["wq"] + p["bq"]
    k = nx @ p["wk"] + p["bk"]
    v = nx @ p["wv"] + p["bv"]
    q = q.reshape(B, S, H, DH).transpose(0, 2, 1, 3)
    k = k.reshape(B, S, H, DH).transpose(0, 2, 1, 3)
    v = v.reshape(B, S, H, DH).transpose(0, 2, 1, 3)
    s = jnp.einsum("bhqd,bhkd->bhqk", q, k) / math.sqrt(DH)
    mask = jnp.tril(jnp.ones((S, S), bool))
    s = jnp.where(mask, s, NEG_INF)
    pattn = jax.nn.softmax(s, axis=-1)
    z = jnp.einsum("bhqk,bhkd->bhqd", pattn, v)
    z = z.transpose(0, 2, 1, 3).reshape(B, S, D)
    attn_out = z @ p["wo"] + p["bo"]
    resid_mid = x + attn_out
    n2 = ln(resid_mid, p["ln2_g"], p["ln2_b"])
    c = math.sqrt(2.0 / math.pi)
    h1 = n2 @ p["w1"] + p["b1"]
    h1 = 0.5 * h1 * (1.0 + jnp.tanh(c * (h1 + 0.044715 * h1 ** 3)))
    ff = h1 @ p["w2"] + p["b2"]
    return resid_mid + ff


if __name__ == "__main__":
    key = jax.random.PRNGKey(0)
    kx, kp = jax.random.split(key)
    x = jax.random.normal(kx, (B, S, D), jnp.float32)
    params = init_params(kp)

    out = transformer_block(x, params)
    out = jax.block_until_ready(out)

    ref = reference_block(x, params)
    assert out.shape == (B, S, D)
    assert jnp.allclose(out, ref, atol=2e-2, rtol=2e-2), "mismatch vs reference"

    print("KERNEL_OK")
</pallas_src>

<mosaic_0001>
module attributes {stable_mosaic.version = 11 : i64} {
  func.func @block_kernel(%arg0: i32, %arg1: memref<1x8x32xf32, #tpu.memory_space<vmem>>, %arg2: memref<8x8xf32, #tpu.memory_space<vmem>>, %arg3: memref<1x32xf32, #tpu.memory_space<vmem>>, %arg4: memref<1x32xf32, #tpu.memory_space<vmem>>, %arg5: memref<32x96xf32, #tpu.memory_space<vmem>>, %arg6: memref<1x96xf32, #tpu.memory_space<vmem>>, %arg7: memref<32x32xf32, #tpu.memory_space<vmem>>, %arg8: memref<1x32xf32, #tpu.memory_space<vmem>>, %arg9: memref<1x32xf32, #tpu.memory_space<vmem>>, %arg10: memref<1x32xf32, #tpu.memory_space<vmem>>, %arg11: memref<32x128xf32, #tpu.memory_space<vmem>>, %arg12: memref<1x128xf32, #tpu.memory_space<vmem>>, %arg13: memref<128x32xf32, #tpu.memory_space<vmem>>, %arg14: memref<1x32xf32, #tpu.memory_space<vmem>>, %arg15: memref<1x8x32xf32, #tpu.memory_space<vmem>>) attributes {dimension_semantics = [#tpu.dimension_semantics<parallel>], iteration_bounds = array<i64: 2>, scalar_prefetch = 0 : i64, scratch_operands = 0 : i64, tpu.core_type = #tpu.core_type<tc>, window_params = [{transform_indices = @transform_0, window_bounds = array<i64: 1, 8, 32>}, {pipeline_mode = #tpu.pipeline_mode<synchronous>, transform_indices = @transform_1, window_bounds = array<i64: 8, 8>}, {pipeline_mode = #tpu.pipeline_mode<synchronous>, transform_indices = @transform_2, window_bounds = array<i64: 1, 32>}, {pipeline_mode = #tpu.pipeline_mode<synchronous>, transform_indices = @transform_3, window_bounds = array<i64: 1, 32>}, {pipeline_mode = #tpu.pipeline_mode<synchronous>, transform_indices = @transform_4, window_bounds = array<i64: 32, 96>}, {pipeline_mode = #tpu.pipeline_mode<synchronous>, transform_indices = @transform_5, window_bounds = array<i64: 1, 96>}, {pipeline_mode = #tpu.pipeline_mode<synchronous>, transform_indices = @transform_6, window_bounds = array<i64: 32, 32>}, {pipeline_mode = #tpu.pipeline_mode<synchronous>, transform_indices = @transform_7, window_bounds = array<i64: 1, 32>}, {pipeline_mode = #tpu.pipeline_mode<synchronous>, transform_indices = @transform_8, window_bounds = array<i64: 1, 32>}, {pipeline_mode = #tpu.pipeline_mode<synchronous>, transform_indices = @transform_9, window_bounds = array<i64: 1, 32>}, {pipeline_mode = #tpu.pipeline_mode<synchronous>, transform_indices = @transform_10, window_bounds = array<i64: 32, 128>}, {pipeline_mode = #tpu.pipeline_mode<synchronous>, transform_indices = @transform_11, window_bounds = array<i64: 1, 128>}, {pipeline_mode = #tpu.pipeline_mode<synchronous>, transform_indices = @transform_12, window_bounds = array<i64: 128, 32>}, {pipeline_mode = #tpu.pipeline_mode<synchronous>, transform_indices = @transform_13, window_bounds = array<i64: 1, 32>}, {transform_indices = @transform_14, window_bounds = array<i64: 1, 8, 32>}]} {
    %c0 = arith.constant 0 : index
    %c0_0 = arith.constant 0 : index
    %c0_1 = arith.constant 0 : index
    %0 = vector.load %arg1[%c0, %c0_0, %c0_1] : memref<1x8x32xf32, #tpu.memory_space<vmem>>, vector<1x8x32xf32>
    %1 = vector.shape_cast %0 : vector<1x8x32xf32> to vector<8x32xf32>
    %c0_2 = arith.constant 0 : index
    %c0_3 = arith.constant 0 : index
    %2 = vector.load %arg3[%c0_2, %c0_3] : memref<1x32xf32, #tpu.memory_space<vmem>>, vector<1x32xf32>
    %c0_4 = arith.constant 0 : index
    %c0_5 = arith.constant 0 : index
    %3 = vector.load %arg4[%c0_4, %c0_5] : memref<1x32xf32, #tpu.memory_space<vmem>>, vector<1x32xf32>
    %cst = arith.constant dense<0.000000e+00> : vector<8xf32>
    %4 = vector.multi_reduction <add>, %1, %cst [1] : vector<8x32xf32> to vector<8xf32>
    %5 = vector.shape_cast %4 : vector<8xf32> to vector<8x1xf32>
    %cst_6 = arith.constant 3.200000e+01 : f32
    %6 = vector.broadcast %cst_6 : f32 to vector<8x1xf32>
    %7 = arith.divf %5, %6 : vector<8x1xf32>
    %8 = vector.broadcast %7 : vector<8x1xf32> to vector<8x32xf32>
    %9 = arith.subf %1, %8 : vector<8x32xf32>
    %10 = arith.mulf %9, %9 : vector<8x32xf32>
    %cst_7 = arith.constant dense<0.000000e+00> : vector<8xf32>
    %11 = vector.multi_reduction <add>, %10, %cst_7 [1] : vector<8x32xf32> to vector<8xf32>
    %12 = vector.shape_cast %11 : vector<8xf32> to vector<8x1xf32>
    %cst_8 = arith.constant 3.200000e+01 : f32
    %13 = vector.broadcast %cst_8 : f32 to vector<8x1xf32>
    %14 = arith.divf %12, %13 : vector<8x1xf32>
    %15 = vector.broadcast %7 : vector<8x1xf32> to vector<8x32xf32>
    %16 = arith.subf %1, %15 : vector<8x32xf32>
    %cst_9 = arith.constant 9.99999974E-6 : f32
    %17 = vector.broadcast %cst_9 : f32 to vector<8x1xf32>
    %18 = arith.addf %14, %17 : vector<8x1xf32>
    %19 = math.rsqrt %18 : vector<8x1xf32>
    %20 = vector.broadcast %19 : vector<8x1xf32> to vector<8x32xf32>
    %21 = arith.mulf %16, %20 : vector<8x32xf32>
    %22 = vector.broadcast %2 : vector<1x32xf32> to vector<8x32xf32>
    %23 = arith.mulf %21, %22 : vector<8x32xf32>
    %24 = vector.broadcast %3 : vector<1x32xf32> to vector<8x32xf32>
    %25 = arith.addf %23, %24 : vector<8x32xf32>
    %c0_10 = arith.constant 0 : index
    %c0_11 = arith.constant 0 : index
    %26 = vector.load %arg5[%c0_10, %c0_11] : memref<32x96xf32, #tpu.memory_space<vmem>>, vector<32x96xf32>
    %cst_12 = arith.constant dense<0.000000e+00> : vector<8x96xf32>
    %27 = tpu.matmul %25, %26, %cst_12 {dimension_numbers = #tpu.dot_dimension_numbers<[1], [0], [0], [1], [0, 0, 1, 1], [], []>} : vector<8x32xf32>, vector<32x96xf32>, vector<8x96xf32> -> vector<8x96xf32>
    %c0_13 = arith.constant 0 : index
    %c0_14 = arith.constant 0 : index
    %28 = vector.load %arg6[%c0_13, %c0_14] : memref<1x96xf32, #tpu.memory_space<vmem>>, vector<1x96xf32>
    %29 = vector.broadcast %28 : vector<1x96xf32> to vector<8x96xf32>
    %30 = arith.addf %27, %29 : vector<8x96xf32>
    %31 = vector.extract_strided_slice %30 {offsets = [0, 0], sizes = [8, 32], strides = [1, 1]} : vector<8x96xf32> to vector<8x32xf32>
    %32 = vector.extract_strided_slice %30 {offsets = [0, 32], sizes = [8, 32], strides = [1, 1]} : vector<8x96xf32> to vector<8x32xf32>
    %33 = vector.extract_strided_slice %30 {offsets = [0, 64], sizes = [8, 32], strides = [1, 1]} : vector<8x96xf32> to vector<8x32xf32>
    %c0_15 = arith.constant 0 : index
    %c0_16 = arith.constant 0 : index
    %34 = vector.load %arg2[%c0_15, %c0_16] : memref<8x8xf32, #tpu.memory_space<vmem>>, vector<8x8xf32>
    %35 = vector.extract_strided_slice %31 {offsets = [0, 0], sizes = [8, 8], strides = [1, 1]} : vector<8x32xf32> to vector<8x8xf32>
    %36 = vector.extract_strided_slice %32 {offsets = [0, 0], sizes = [8, 8], strides = [1, 1]} : vector<8x32xf32> to vector<8x8xf32>
    %37 = vector.extract_strided_slice %33 {offsets = [0, 0], sizes = [8, 8], strides = [1, 1]} : vector<8x32xf32> to vector<8x8xf32>
    %38 = tpu.transpose %36, [1, 0] : vector<8x8xf32> -> vector<8x8xf32>
    %cst_17 = arith.constant dense<0.000000e+00> : vector<8x8xf32>
    %39 = tpu.matmul %35, %38, %cst_17 {dimension_numbers = #tpu.dot_dimension_numbers<[1], [0], [0], [1], [0, 0, 1, 1], [], []>} : vector<8x8xf32>, vector<8x8xf32>, vector<8x8xf32> -> vector<8x8xf32>
    %40 = arith.addf %39, %34 : vector<8x8xf32>
    %cst_18 = arith.constant dense<0xFF800000> : vector<8xf32>
    %41 = vector.multi_reduction <maximumf>, %40, %cst_18 [1] : vector<8x8xf32> to vector<8xf32>
    %42 = vector.shape_cast %41 : vector<8xf32> to vector<8x1xf32>
    %43 = vector.broadcast %42 : vector<8x1xf32> to vector<8x8xf32>
    %44 = arith.subf %40, %43 : vector<8x8xf32>
    %45 = math.exp %44 : vector<8x8xf32>
    %cst_19 = arith.constant dense<0.000000e+00> : vector<8xf32>
    %46 = vector.multi_reduction <add>, %45, %cst_19 [1] : vector<8x8xf32> to vector<8xf32>
    %47 = vector.shape_cast %46 : vector<8xf32> to vector<8x1xf32>
    %48 = tpu.reciprocal %47 {approx = true} : vector<8x1xf32> -> vector<8x1xf32>
    %49 = vector.broadcast %48 : vector<8x1xf32> to vector<8x8xf32>
    %50 = arith.mulf %45, %49 : vector<8x8xf32>
    %cst_20 = arith.constant dense<0.000000e+00> : vector<8x8xf32>
    %51 = tpu.matmul %50, %37, %cst_20 {dimension_numbers = #tpu.dot_dimension_numbers<[1], [0], [0], [1], [0, 0, 1, 1], [], []>} : vector<8x8xf32>, vector<8x8xf32>, vector<8x8xf32> -> vector<8x8xf32>
    %52 = vector.extract_strided_slice %31 {offsets = [0, 8], sizes = [8, 8], strides = [1, 1]} : vector<8x32xf32> to vector<8x8xf32>
    %53 = vector.extract_strided_slice %32 {offsets = [0, 8], sizes = [8, 8], strides = [1, 1]} : vector<8x32xf32> to vector<8x8xf32>
    %54 = vector.extract_strided_slice %33 {offsets = [0, 8], sizes = [8, 8], strides = [1, 1]} : vector<8x32xf32> to vector<8x8xf32>
    %55 = tpu.transpose %53, [1, 0] : vector<8x8xf32> -> vector<8x8xf32>
    %cst_21 = arith.constant dense<0.000000e+00> : vector<8x8xf32>
    %56 = tpu.matmul %52, %55, %cst_21 {dimension_numbers = #tpu.dot_dimension_numbers<[1], [0], [0], [1], [0, 0, 1, 1], [], []>} : vector<8x8xf32>, vector<8x8xf32>, vector<8x8xf32> -> vector<8x8xf32>
    %57 = arith.addf %56, %34 : vector<8x8xf32>
    %cst_22 = arith.constant dense<0xFF800000> : vector<8xf32>
    %58 = vector.multi_reduction <maximumf>, %57, %cst_22 [1] : vector<8x8xf32> to vector<8xf32>
    %59 = vector.shape_cast %58 : vector<8xf32> to vector<8x1xf32>
    %60 = vector.broadcast %59 : vector<8x1xf32> to vector<8x8xf32>
    %61 = arith.subf %57, %60 : vector<8x8xf32>
    %62 = math.exp %61 : vector<8x8xf32>
    %cst_23 = arith.constant dense<0.000000e+00> : vector<8xf32>
    %63 = vector.multi_reduction <add>, %62, %cst_23 [1] : vector<8x8xf32> to vector<8xf32>
    %64 = vector.shape_cast %63 : vector<8xf32> to vector<8x1xf32>
    %65 = tpu.reciprocal %64 {approx = true} : vector<8x1xf32> -> vector<8x1xf32>
    %66 = vector.broadcast %65 : vector<8x1xf32> to vector<8x8xf32>
    %67 = arith.mulf %62, %66 : vector<8x8xf32>
    %cst_24 = arith.constant dense<0.000000e+00> : vector<8x8xf32>
    %68 = tpu.matmul %67, %54, %cst_24 {dimension_numbers = #tpu.dot_dimension_numbers<[1], [0], [0], [1], [0, 0, 1, 1], [], []>} : vector<8x8xf32>, vector<8x8xf32>, vector<8x8xf32> -> vector<8x8xf32>
    %69 = vector.extract_strided_slice %31 {offsets = [0, 16], sizes = [8, 8], strides = [1, 1]} : vector<8x32xf32> to vector<8x8xf32>
    %70 = vector.extract_strided_slice %32 {offsets = [0, 16], sizes = [8, 8], strides = [1, 1]} : vector<8x32xf32> to vector<8x8xf32>
    %71 = vector.extract_strided_slice %33 {offsets = [0, 16], sizes = [8, 8], strides = [1, 1]} : vector<8x32xf32> to vector<8x8xf32>
    %72 = tpu.transpose %70, [1, 0] : vector<8x8xf32> -> vector<8x8xf32>
    %cst_25 = arith.constant dense<0.000000e+00> : vector<8x8xf32>
    %73 = tpu.matmul %69, %72, %cst_25 {dimension_numbers = #tpu.dot_dimension_numbers<[1], [0], [0], [1], [0, 0, 1, 1], [], []>} : vector<8x8xf32>, vector<8x8xf32>, vector<8x8xf32> -> vector<8x8xf32>
    %74 = arith.addf %73, %34 : vector<8x8xf32>
    %cst_26 = arith.constant dense<0xFF800000> : vector<8xf32>
    %75 = vector.multi_reduction <maximumf>, %74, %cst_26 [1] : vector<8x8xf32> to vector<8xf32>
    %76 = vector.shape_cast %75 : vector<8xf32> to vector<8x1xf32>
    %77 = vector.broadcast %76 : vector<8x1xf32> to vector<8x8xf32>
    %78 = arith.subf %74, %77 : vector<8x8xf32>
    %79 = math.exp %78 : vector<8x8xf32>
    %cst_27 = arith.constant dense<0.000000e+00> : vector<8xf32>
    %80 = vector.multi_reduction <add>, %79, %cst_27 [1] : vector<8x8xf32> to vector<8xf32>
    %81 = vector.shape_cast %80 : vector<8xf32> to vector<8x1xf32>
    %82 = tpu.reciprocal %81 {approx = true} : vector<8x1xf32> -> vector<8x1xf32>
    %83 = vector.broadcast %82 : vector<8x1xf32> to vector<8x8xf32>
    %84 = arith.mulf %79, %83 : vector<8x8xf32>
    %cst_28 = arith.constant dense<0.000000e+00> : vector<8x8xf32>
    %85 = tpu.matmul %84, %71, %cst_28 {dimension_numbers = #tpu.dot_dimension_numbers<[1], [0], [0], [1], [0, 0, 1, 1], [], []>} : vector<8x8xf32>, vector<8x8xf32>, vector<8x8xf32> -> vector<8x8xf32>
    %86 = vector.extract_strided_slice %31 {offsets = [0, 24], sizes = [8, 8], strides = [1, 1]} : vector<8x32xf32> to vector<8x8xf32>
    %87 = vector.extract_strided_slice %32 {offsets = [0, 24], sizes = [8, 8], strides = [1, 1]} : vector<8x32xf32> to vector<8x8xf32>
    %88 = vector.extract_strided_slice %33 {offsets = [0, 24], sizes = [8, 8], strides = [1, 1]} : vector<8x32xf32> to vector<8x8xf32>
    %89 = tpu.transpose %87, [1, 0] : vector<8x8xf32> -> vector<8x8xf32>
    %cst_29 = arith.constant dense<0.000000e+00> : vector<8x8xf32>
    %90 = tpu.matmul %86, %89, %cst_29 {dimension_numbers = #tpu.dot_dimension_numbers<[1], [0], [0], [1], [0, 0, 1, 1], [], []>} : vector<8x8xf32>, vector<8x8xf32>, vector<8x8xf32> -> vector<8x8xf32>
    %91 = arith.addf %90, %34 : vector<8x8xf32>
    %cst_30 = arith.constant dense<0xFF800000> : vector<8xf32>
    %92 = vector.multi_reduction <maximumf>, %91, %cst_30 [1] : vector<8x8xf32> to vector<8xf32>
    %93 = vector.shape_cast %92 : vector<8xf32> to vector<8x1xf32>
    %94 = vector.broadcast %93 : vector<8x1xf32> to vector<8x8xf32>
    %95 = arith.subf %91, %94 : vector<8x8xf32>
    %96 = math.exp %95 : vector<8x8xf32>
    %cst_31 = arith.constant dense<0.000000e+00> : vector<8xf32>
    %97 = vector.multi_reduction <add>, %96, %cst_31 [1] : vector<8x8xf32> to vector<8xf32>
    %98 = vector.shape_cast %97 : vector<8xf32> to vector<8x1xf32>
    %99 = tpu.reciprocal %98 {approx = true} : vector<8x1xf32> -> vector<8x1xf32>
    %100 = vector.broadcast %99 : vector<8x1xf32> to vector<8x8xf32>
    %101 = arith.mulf %96, %100 : vector<8x8xf32>
    %cst_32 = arith.constant dense<0.000000e+00> : vector<8x8xf32>
    %102 = tpu.matmul %101, %88, %cst_32 {dimension_numbers = #tpu.dot_dimension_numbers<[1], [0], [0], [1], [0, 0, 1, 1], [], []>} : vector<8x8xf32>, vector<8x8xf32>, vector<8x8xf32> -> vector<8x8xf32>
    %103 = tpu.concatenate %51, %68, %85, %102 in 1 : vector<8x8xf32>, vector<8x8xf32>, vector<8x8xf32>, vector<8x8xf32> -> vector<8x32xf32>
    %c0_33 = arith.constant 0 : index
    %c0_34 = arith.constant 0 : index
    %104 = vector.load %arg7[%c0_33, %c0_34] : memref<32x32xf32, #tpu.memory_space<vmem>>, vector<32x32xf32>
    %cst_35 = arith.constant dense<0.000000e+00> : vector<8x32xf32>
    %105 = tpu.matmul %103, %104, %cst_35 {dimension_numbers = #tpu.dot_dimension_numbers<[1], [0], [0], [1], [0, 0, 1, 1], [], []>} : vector<8x32xf32>, vector<32x32xf32>, vector<8x32xf32> -> vector<8x32xf32>
    %c0_36 = arith.constant 0 : index
    %c0_37 = arith.constant 0 : index
    %106 = vector.load %arg8[%c0_36, %c0_37] : memref<1x32xf32, #tpu.memory_space<vmem>>, vector<1x32xf32>
    %107 = vector.broadcast %106 : vector<1x32xf32> to vector<8x32xf32>
    %108 = arith.addf %105, %107 : vector<8x32xf32>
    %109 = arith.addf %1, %108 : vector<8x32xf32>
    %c0_38 = arith.constant 0 : index
    %c0_39 = arith.constant 0 : index
    %110 = vector.load %arg9[%c0_38, %c0_39] : memref<1x32xf32, #tpu.memory_space<vmem>>, vector<1x32xf32>
    %c0_40 = arith.constant 0 : index
    %c0_41 = arith.constant 0 : index
    %111 = vector.load %arg10[%c0_40, %c0_41] : memref<1x32xf32, #tpu.memory_space<vmem>>, vector<1x32xf32>
    %cst_42 = arith.constant dense<0.000000e+00> : vector<8xf32>
    %112 = vector.multi_reduction <add>, %109, %cst_42 [1] : vector<8x32xf32> to vector<8xf32>
    %113 = vector.shape_cast %112 : vector<8xf32> to vector<8x1xf32>
    %cst_43 = arith.constant 3.200000e+01 : f32
    %114 = vector.broadcast %cst_43 : f32 to vector<8x1xf32>
    %115 = arith.divf %113, %114 : vector<8x1xf32>
    %116 = vector.broadcast %115 : vector<8x1xf32> to vector<8x32xf32>
    %117 = arith.subf %109, %116 : vector<8x32xf32>
    %118 = arith.mulf %117, %117 : vector<8x32xf32>
    %cst_44 = arith.constant dense<0.000000e+00> : vector<8xf32>
    %119 = vector.multi_reduction <add>, %118, %cst_44 [1] : vector<8x32xf32> to vector<8xf32>
    %120 = vector.shape_cast %119 : vector<8xf32> to vector<8x1xf32>
    %cst_45 = arith.constant 3.200000e+01 : f32
    %121 = vector.broadcast %cst_45 : f32 to vector<8x1xf32>
    %122 = arith.divf %120, %121 : vector<8x1xf32>
    %123 = vector.broadcast %115 : vector<8x1xf32> to vector<8x32xf32>
    %124 = arith.subf %109, %123 : vector<8x32xf32>
    %cst_46 = arith.constant 9.99999974E-6 : f32
    %125 = vector.broadcast %cst_46 : f32 to vector<8x1xf32>
    %126 = arith.addf %122, %125 : vector<8x1xf32>
    %127 = math.rsqrt %126 : vector<8x1xf32>
    %128 = vector.broadcast %127 : vector<8x1xf32> to vector<8x32xf32>
    %129 = arith.mulf %124, %128 : vector<8x32xf32>
    %130 = vector.broadcast %110 : vector<1x32xf32> to vector<8x32xf32>
    %131 = arith.mulf %129, %130 : vector<8x32xf32>
    %132 = vector.broadcast %111 : vector<1x32xf32> to vector<8x32xf32>
    %133 = arith.addf %131, %132 : vector<8x32xf32>
    %c0_47 = arith.constant 0 : index
    %c0_48 = arith.constant 0 : index
    %134 = vector.load %arg11[%c0_47, %c0_48] : memref<32x128xf32, #tpu.memory_space<vmem>>, vector<32x128xf32>
    %cst_49 = arith.constant dense<0.000000e+00> : vector<8x128xf32>
    %135 = tpu.matmul %133, %134, %cst_49 {dimension_numbers = #tpu.dot_dimension_numbers<[1], [0], [0], [1], [0, 0, 1, 1], [], []>} : vector<8x32xf32>, vector<32x128xf32>, vector<8x128xf32> -> vector<8x128xf32>
    %c0_50 = arith.constant 0 : index
    %c0_51 = arith.constant 0 : index
    %136 = vector.load %arg12[%c0_50, %c0_51] : memref<1x128xf32, #tpu.memory_space<vmem>>, vector<1x128xf32>
    %137 = vector.broadcast %136 : vector<1x128xf32> to vector<8x128xf32>
    %138 = arith.addf %135, %137 : vector<8x128xf32>
    %cst_52 = arith.constant 5.000000e-01 : f32
    %139 = vector.broadcast %cst_52 : f32 to vector<8x128xf32>
    %140 = arith.mulf %139, %138 : vector<8x128xf32>
    %cst_53 = arith.constant 4.471500e-02 : f32
    %141 = vector.broadcast %cst_53 : f32 to vector<8x128xf32>
    %142 = arith.mulf %141, %138 : vector<8x128xf32>
    %143 = arith.mulf %142, %138 : vector<8x128xf32>
    %144 = arith.mulf %143, %138 : vector<8x128xf32>
    %145 = arith.addf %138, %144 : vector<8x128xf32>
    %cst_54 = arith.constant 0.797884583 : f32
    %146 = vector.broadcast %cst_54 : f32 to vector<8x128xf32>
    %147 = arith.mulf %146, %145 : vector<8x128xf32>
    %148 = math.tanh %147 : vector<8x128xf32>
    %cst_55 = arith.constant 1.000000e+00 : f32
    %149 = vector.broadcast %cst_55 : f32 to vector<8x128xf32>
    %150 = arith.addf %149, %148 : vector<8x128xf32>
    %151 = arith.mulf %140, %150 : vector<8x128xf32>
    %c0_56 = arith.constant 0 : index
    %c0_57 = arith.constant 0 : index
    %152 = vector.load %arg13[%c0_56, %c0_57] : memref<128x32xf32, #tpu.memory_space<vmem>>, vector<128x32xf32>
    %cst_58 = arith.constant dense<0.000000e+00> : vector<8x32xf32>
    %153 = tpu.matmul %151, %152, %cst_58 {dimension_numbers = #tpu.dot_dimension_numbers<[1], [0], [0], [1], [0, 0, 1, 1], [], []>} : vector<8x128xf32>, vector<128x32xf32>, vector<8x32xf32> -> vector<8x32xf32>
    %c0_59 = arith.constant 0 : index
    %c0_60 = arith.constant 0 : index
    %154 = vector.load %arg14[%c0_59, %c0_60] : memref<1x32xf32, #tpu.memory_space<vmem>>, vector<1x32xf32>
    %155 = vector.broadcast %154 : vector<1x32xf32> to vector<8x32xf32>
    %156 = arith.addf %153, %155 : vector<8x32xf32>
    %157 = arith.addf %109, %156 : vector<8x32xf32>
    %c0_61 = arith.constant 0 : index
    %c0_62 = arith.constant 0 : index
    %c0_63 = arith.constant 0 : index
    %158 = vector.load %arg15[%c0_61, %c0_62, %c0_63] : memref<1x8x32xf32, #tpu.memory_space<vmem>>, vector<1x8x32xf32>
    %159 = vector.shape_cast %158 : vector<1x8x32xf32> to vector<8x32xf32>
    %160 = vector.shape_cast %157 : vector<8x32xf32> to vector<1x8x32xf32>
    tpu.vector_store %arg15[%c0_61, %c0_62, %c0_63], %160 {strides = array<i32>} : memref<1x8x32xf32, #tpu.memory_space<vmem>>, vector<1x8x32xf32>,
    return
  }
  func.func @transform_0(%arg0: i32) -> (i32, i32, i32) {
    %c0_i32 = arith.constant 0 : i32
    %c0_i32_0 = arith.constant 0 : i32
    %c0_i32_1 = arith.constant 0 : i32
    return %arg0, %c0_i32, %c0_i32_0 : i32, i32, i32
  }
  func.func @transform_1(%arg0: i32) -> (i32, i32) {
    %c0_i32 = arith.constant 0 : i32
    %c0_i32_0 = arith.constant 0 : i32
    %c0_i32_1 = arith.constant 0 : i32
    return %c0_i32, %c0_i32_0 : i32, i32
  }
  func.func @transform_2(%arg0: i32) -> (i32, i32) {
    %c0_i32 = arith.constant 0 : i32
    %c0_i32_0 = arith.constant 0 : i32
    %c0_i32_1 = arith.constant 0 : i32
    return %c0_i32, %c0_i32_0 : i32, i32
  }
  func.func @transform_3(%arg0: i32) -> (i32, i32) {
    %c0_i32 = arith.constant 0 : i32
    %c0_i32_0 = arith.constant 0 : i32
    %c0_i32_1 = arith.constant 0 : i32
    return %c0_i32, %c0_i32_0 : i32, i32
  }
  func.func @transform_4(%arg0: i32) -> (i32, i32) {
    %c0_i32 = arith.constant 0 : i32
    %c0_i32_0 = arith.constant 0 : i32
    %c0_i32_1 = arith.constant 0 : i32
    return %c0_i32, %c0_i32_0 : i32, i32
  }
  func.func @transform_5(%arg0: i32) -> (i32, i32) {
    %c0_i32 = arith.constant 0 : i32
    %c0_i32_0 = arith.constant 0 : i32
    %c0_i32_1 = arith.constant 0 : i32
    return %c0_i32, %c0_i32_0 : i32, i32
  }
  func.func @transform_6(%arg0: i32) -> (i32, i32) {
    %c0_i32 = arith.constant 0 : i32
    %c0_i32_0 = arith.constant 0 : i32
    %c0_i32_1 = arith.constant 0 : i32
    return %c0_i32, %c0_i32_0 : i32, i32
  }
  func.func @transform_7(%arg0: i32) -> (i32, i32) {
    %c0_i32 = arith.constant 0 : i32
    %c0_i32_0 = arith.constant 0 : i32
    %c0_i32_1 = arith.constant 0 : i32
    return %c0_i32, %c0_i32_0 : i32, i32
  }
  func.func @transform_8(%arg0: i32) -> (i32, i32) {
    %c0_i32 = arith.constant 0 : i32
    %c0_i32_0 = arith.constant 0 : i32
    %c0_i32_1 = arith.constant 0 : i32
    return %c0_i32, %c0_i32_0 : i32, i32
  }
  func.func @transform_9(%arg0: i32) -> (i32, i32) {
    %c0_i32 = arith.constant 0 : i32
    %c0_i32_0 = arith.constant 0 : i32
    %c0_i32_1 = arith.constant 0 : i32
    return %c0_i32, %c0_i32_0 : i32, i32
  }
  func.func @transform_10(%arg0: i32) -> (i32, i32) {
    %c0_i32 = arith.constant 0 : i32
    %c0_i32_0 = arith.constant 0 : i32
    %c0_i32_1 = arith.constant 0 : i32
    return %c0_i32, %c0_i32_0 : i32, i32
  }
  func.func @transform_11(%arg0: i32) -> (i32, i32) {
    %c0_i32 = arith.constant 0 : i32
    %c0_i32_0 = arith.constant 0 : i32
    %c0_i32_1 = arith.constant 0 : i32
    return %c0_i32, %c0_i32_0 : i32, i32
  }
  func.func @transform_12(%arg0: i32) -> (i32, i32) {
    %c0_i32 = arith.constant 0 : i32
    %c0_i32_0 = arith.constant 0 : i32
    %c0_i32_1 = arith.constant 0 : i32
    return %c0_i32, %c0_i32_0 : i32, i32
  }
  func.func @transform_13(%arg0: i32) -> (i32, i32) {
    %c0_i32 = arith.constant 0 : i32
    %c0_i32_0 = arith.constant 0 : i32
    %c0_i32_1 = arith.constant 0 : i32
    return %c0_i32, %c0_i32_0 : i32, i32
  }
  func.func @transform_14(%arg0: i32) -> (i32, i32, i32) {
    %c0_i32 = arith.constant 0 : i32
    %c0_i32_0 = arith.constant 0 : i32
    %c0_i32_1 = arith.constant 0 : i32
    return %arg0, %c0_i32, %c0_i32_0 : i32, i32, i32
  }
}

</mosaic_0001>

<llo_original>
// kernel: tpu_custom_call.1
$region0: #{tpu_custom_call.1}
  #allocation0 [shape = 'u32[]', space=smem, size = 0x4, offset = 0x4, fixed_abs, tag = 'smem constant byte address 0x4 - core index']
  #allocation1 [shape = 'u32[144,128]{1,0:T(1,128)}', space=vmem, size = 0x12000, scoped, tag = 'internal scratch']
  %s0 = inlined_call_operand.vmem [shape: f32[2,8,32], index: 0, kind: input, shape index: {}]
  %s1 = inlined_call_operand.vmem [shape: f32[8,8], index: 1, kind: input, shape index: {}]
  %s2 = inlined_call_operand.vmem [shape: f32[1,32], index: 2, kind: input, shape index: {}]
  %s3 = inlined_call_operand.vmem [shape: f32[1,32], index: 3, kind: input, shape index: {}]
  %s4 = inlined_call_operand.vmem [shape: f32[32,96], index: 4, kind: input, shape index: {}]
  %s5 = inlined_call_operand.vmem [shape: f32[1,96], index: 5, kind: input, shape index: {}]
  %s6 = inlined_call_operand.vmem [shape: f32[32,32], index: 6, kind: input, shape index: {}]
  %s7 = inlined_call_operand.vmem [shape: f32[1,32], index: 7, kind: input, shape index: {}]
  %s8 = inlined_call_operand.vmem [shape: f32[1,32], index: 8, kind: input, shape index: {}]
  %s9 = inlined_call_operand.vmem [shape: f32[1,32], index: 9, kind: input, shape index: {}]
  %s10 = inlined_call_operand.vmem [shape: f32[32,128], index: 10, kind: input, shape index: {}]
  %s11 = inlined_call_operand.vmem [shape: f32[1,128], index: 11, kind: input, shape index: {}]
  %s12 = inlined_call_operand.vmem [shape: f32[128,32], index: 12, kind: input, shape index: {}]
  %s13 = inlined_call_operand.vmem [shape: f32[1,32], index: 13, kind: input, shape index: {}]
  %s14 = inlined_call_operand.hbm [shape: f32[2,8,32], index: 14, kind: output, shape index: {}]
  %s15 = sld [smem:[#allocation0]]
  $region89: #{tpu_custom_call.1} parent=0
    _
  %s17 = ssub.s32 1, %s15
  %s18 = scalar_select 0, %s17, %s15
  $region1: #{tpu_custom_call.1} parent=0
    #allocation2 [shape = 'u8[8192]{0}', space=vmem, size = 0x2000, scoped, tag = 'output window, operand 0']
    #allocation3 [shape = 's32[2]{0}', space=sflag, size = 0x8, scoped, tag = 'scoped memory for tpu_custom_call.1']
    %19 = vsyncpa [#allocation3], 0
    %s20 = scalar_lea.sflag [#allocation3], 1
    %21 = vsyncpa %s20, 0
    loop: start=0, step=1, limit=4
    $region2: #{tpu_custom_call.1} parent=1 // loop_pre_header
      _
    $region3: #{tpu_custom_call.1} parent=1 // loop_header
      %s23 = sphi 0, %s27
      %p24 = scmp.ge.s32.totalorder %s23, 4
      %s33 = sphi 0, %s35
      %s36 = sphi 0, %s33
      %s37 = sphi 0, %s36
      %s53 = sphi 0, %s37
      %s57 = sphi 0, %s57
      %s59 = sphi 0, %s57
      %s60 = sphi 0, %s59
      %s74 = sphi 0, %s60
      %s78 = sphi 0, %s78
      %s80 = sphi 0, %s78
      %s81 = sphi 0, %s80
      %s95 = sphi 0, %s81
      %s99 = sphi 0, %s99
      %s101 = sphi 0, %s99
      %s102 = sphi 0, %s101
      %s116 = sphi 0, %s102
      %s120 = sphi 0, %s120
      %s122 = sphi 0, %s120
      %s123 = sphi 0, %s122
      %s137 = sphi 0, %s123
      %s141 = sphi 0, %s141
      %s143 = sphi 0, %s141
      %s144 = sphi 0, %s143
      %s158 = sphi 0, %s144
      %s162 = sphi 0, %s162
      %s164 = sphi 0, %s162
      %s165 = sphi 0, %s164
      %s179 = sphi 0, %s165
      %s183 = sphi 0, %s183
      %s185 = sphi 0, %s183
      %s186 = sphi 0, %s185
      %s200 = sphi 0, %s186
      %s204 = sphi 0, %s204
      %s206 = sphi 0, %s204
      %s207 = sphi 0, %s206
      %s221 = sphi 0, %s207
      %s225 = sphi 0, %s225
      %s227 = sphi 0, %s225
      %s228 = sphi 0, %s227
      %s242 = sphi 0, %s228
      %s246 = sphi 0, %s246
      %s248 = sphi 0, %s246
      %s249 = sphi 0, %s248
      %s263 = sphi 0, %s249
      %s267 = sphi 0, %s267
      %s269 = sphi 0, %s267
      %s270 = sphi 0, %s269
      %s284 = sphi 0, %s270
      %s288 = sphi 0, %s288
      %s290 = sphi 0, %s288
      %s291 = sphi 0, %s290
      %s305 = sphi 0, %s291
      %s309 = sphi 0, %s309
      %s311 = sphi 0, %s309
      %s312 = sphi 0, %s311
      %s326 = sphi 0, %s312
      %s332 = sphi 0, %s334
      %s335 = sphi 0, %s332
      %s336 = sphi 0, %s335
      %s352 = sphi 0, %s336
    $region4: #{tpu_custom_call.1} parent=1 // loop_header_branch
      %26 = sbr.rel (%p24) target = $region8
    $region5: #{tpu_custom_call.1} parent=1 // loop_body
      %s28 = ssub.s32 %s23, 1
      %s29 = ssub.s32 %s23, 2
      %s30 = sadd.s32 %s23, 1
      %s31 = ssub.s32 %s23, %s30
      %p32 = scmp.eq.s32.totalorder %s31, 0
      %s34 = sadd.s32 %s33, 1
      %s35 = scalar_select %p32, %s33, %s34
      %p38 = pneg %p32
      %p39 = scmp.eq.s32.totalorder %s23, 1
      %p40 = por %p38, %p39
      %p41 = scmp.ne.s32.totalorder %s33, %s36
      %p42 = scmp.eq.s32.totalorder %s23, 0
      %p43 = por %p41, %p42
      %p44 = scmp.ne.s32.totalorder %s33, %s36
      %p45 = scmp.eq.s32.totalorder %s28, 1
      %p46 = por %p44, %p45
      %p47 = scmp.ne.s32.totalorder %s36, %s37
      %p48 = scmp.eq.s32.totalorder %s28, 0
      %p49 = por %p47, %p48
      %p50 = scmp.ne.s32.totalorder %s36, %s37
      %p51 = scmp.eq.s32.totalorder %s29, 1
      %p52 = por %p50, %p51
      %p54 = scmp.ne.s32.totalorder %s37, %s53
      %p55 = scmp.eq.s32.totalorder %s29, 0
      %p56 = por %p54, %p55
      %s58 = sadd.s32 %s57, 1
      %p61 = scmp.eq.s32.totalorder %s23, 1
      %p62 = scmp.ne.s32.totalorder %s57, %s59
      %p63 = scmp.eq.s32.totalorder %s23, 0
      %p64 = por %p62, %p63
      %p65 = scmp.ne.s32.totalorder %s57, %s59
      %p66 = scmp.eq.s32.totalorder %s28, 1
      %p67 = por %p65, %p66
      %p68 = scmp.ne.s32.totalorder %s59, %s60
      %p69 = scmp.eq.s32.totalorder %s28, 0
      %p70 = por %p68, %p69
      %p71 = scmp.ne.s32.totalorder %s59, %s60
      %p72 = scmp.eq.s32.totalorder %s29, 1
      %p73 = por %p71, %p72
      %p75 = scmp.ne.s32.totalorder %s60, %s74
      %p76 = scmp.eq.s32.totalorder %s29, 0
      %p77 = por %p75, %p76
      %s79 = sadd.s32 %s78, 1
      %p82 = scmp.eq.s32.totalorder %s23, 1
      %p83 = scmp.ne.s32.totalorder %s78, %s80
      %p84 = scmp.eq.s32.totalorder %s23, 0
      %p85 = por %p83, %p84
      %p86 = scmp.ne.s32.totalorder %s78, %s80
      %p87 = scmp.eq.s32.totalorder %s28, 1
      %p88 = por %p86, %p87
      %p89 = scmp.ne.s32.totalorder %s80, %s81
      %p90 = scmp.eq.s32.totalorder %s28, 0
      %p91 = por %p89, %p90
      %p92 = scmp.ne.s32.totalorder %s80, %s81
      %p93 = scmp.eq.s32.totalorder %s29, 1
      %p94 = por %p92, %p93
      %p96 = scmp.ne.s32.totalorder %s81, %s95
      %p97 = scmp.eq.s32.totalorder %s29, 0
      %p98 = por %p96, %p97
      %s100 = sadd.s32 %s99, 1
      %p103 = scmp.eq.s32.totalorder %s23, 1
      %p104 = scmp.ne.s32.totalorder %s99, %s101
      %p105 = scmp.eq.s32.totalorder %s23, 0
      %p106 = por %p104, %p105
      %p107 = scmp.ne.s32.totalorder %s99, %s101
      %p108 = scmp.eq.s32.totalorder %s28, 1
      %p109 = por %p107, %p108
      %p110 = scmp.ne.s32.totalorder %s101, %s102
      %p111 = scmp.eq.s32.totalorder %s28, 0
      %p112 = por %p110, %p111
      %p113 = scmp.ne.s32.totalorder %s101, %s102
      %p114 = scmp.eq.s32.totalorder %s29, 1
      %p115 = por %p113, %p114
      %p117 = scmp.ne.s32.totalorder %s102, %s116
      %p118 = scmp.eq.s32.totalorder %s29, 0
      %p119 = por %p117, %p118
      %s121 = sadd.s32 %s120, 1
      %p124 = scmp.eq.s32.totalorder %s23, 1
      %p125 = scmp.ne.s32.totalorder %s120, %s122
      %p126 = scmp.eq.s32.totalorder %s23, 0
      %p127 = por %p125, %p126
      %p128 = scmp.ne.s32.totalorder %s120, %s122
      %p129 = scmp.eq.s32.totalorder %s28, 1
      %p130 = por %p128, %p129
      %p131 = scmp.ne.s32.totalorder %s122, %s123
      %p132 = scmp.eq.s32.totalorder %s28, 0
      %p133 = por %p131, %p132
      %p134 = scmp.ne.s32.totalorder %s122, %s123
      %p135 = scmp.eq.s32.totalorder %s29, 1
      %p136 = por %p134, %p135
      %p138 = scmp.ne.s32.totalorder %s123, %s137
      %p139 = scmp.eq.s32.totalorder %s29, 0
      %p140 = por %p138, %p139
      %s142 = sadd.s32 %s141, 1
      %p145 = scmp.eq.s32.totalorder %s23, 1
      %p146 = scmp.ne.s32.totalorder %s141, %s143
      %p147 = scmp.eq.s32.totalorder %s23, 0
      %p148 = por %p146, %p147
      %p149 = scmp.ne.s32.totalorder %s141, %s143
      %p150 = scmp.eq.s32.totalorder %s28, 1
      %p151 = por %p149, %p150
      %p152 = scmp.ne.s32.totalorder %s143, %s144
      %p153 = scmp.eq.s32.totalorder %s28, 0
      %p154 = por %p152, %p153
      %p155 = scmp.ne.s32.totalorder %s143, %s144
      %p156 = scmp.eq.s32.totalorder %s29, 1
      %p157 = por %p155, %p156
      %p159 = scmp.ne.s32.totalorder %s144, %s158
      %p160 = scmp.eq.s32.totalorder %s29, 0
      %p161 = por %p159, %p160
      %s163 = sadd.s32 %s162, 1
      %p166 = scmp.eq.s32.totalorder %s23, 1
      %p167 = scmp.ne.s32.totalorder %s162, %s164
      %p168 = scmp.eq.s32.totalorder %s23, 0
      %p169 = por %p167, %p168
      %p170 = scmp.ne.s32.totalorder %s162, %s164
      %p171 = scmp.eq.s32.totalorder %s28, 1
      %p172 = por %p170, %p171
      %p173 = scmp.ne.s32.totalorder %s164, %s165
      %p174 = scmp.eq.s32.totalorder %s28, 0
      %p175 = por %p173, %p174
      %p176 = scmp.ne.s32.totalorder %s164, %s165
      %p177 = scmp.eq.s32.totalorder %s29, 1
      %p178 = por %p176, %p177
      %p180 = scmp.ne.s32.totalorder %s165, %s179
      %p181 = scmp.eq.s32.totalorder %s29, 0
      %p182 = por %p180, %p181
      %s184 = sadd.s32 %s183, 1
      %p187 = scmp.eq.s32.totalorder %s23, 1
      %p188 = scmp.ne.s32.totalorder %s183, %s185
      %p189 = scmp.eq.s32.totalorder %s23, 0
      %p190 = por %p188, %p189
      %p191 = scmp.ne.s32.totalorder %s183, %s185
      %p192 = scmp.eq.s32.totalorder %s28, 1
      %p193 = por %p191, %p192
      %p194 = scmp.ne.s32.totalorder %s185, %s186
      %p195 = scmp.eq.s32.totalorder %s28, 0
      %p196 = por %p194, %p195
      %p197 = scmp.ne.s32.totalorder %s185, %s186
      %p198 = scmp.eq.s32.totalorder %s29, 1
      %p199 = por %p197, %p198
      %p201 = scmp.ne.s32.totalorder %s186, %s200
      %p202 = scmp.eq.s32.totalorder %s29, 0
      %p203 = por %p201, %p202
      %s205 = sadd.s32 %s204, 1
      %p208 = scmp.eq.s32.totalorder %s23, 1
      %p209 = scmp.ne.s32.totalorder %s204, %s206
      %p210 = scmp.eq.s32.totalorder %s23, 0
      %p211 = por %p209, %p210
      %p212 = scmp.ne.s32.totalorder %s204, %s206
      %p213 = scmp.eq.s32.totalorder %s28, 1
      %p214 = por %p212, %p213
      %p215 = scmp.ne.s32.totalorder %s206, %s207
      %p216 = scmp.eq.s32.totalorder %s28, 0
      %p217 = por %p215, %p216
      %p218 = scmp.ne.s32.totalorder %s206, %s207
      %p219 = scmp.eq.s32.totalorder %s29, 1
      %p220 = por %p218, %p219
      %p222 = scmp.ne.s32.totalorder %s207, %s221
      %p223 = scmp.eq.s32.totalorder %s29, 0
      %p224 = por %p222, %p223
      %s226 = sadd.s32 %s225, 1
      %p229 = scmp.eq.s32.totalorder %s23, 1
      %p230 = scmp.ne.s32.totalorder %s225, %s227
      %p231 = scmp.eq.s32.totalorder %s23, 0
      %p232 = por %p230, %p231
      %p233 = scmp.ne.s32.totalorder %s225, %s227
      %p234 = scmp.eq.s32.totalorder %s28, 1
      %p235 = por %p233, %p234
      %p236 = scmp.ne.s32.totalorder %s227, %s228
      %p237 = scmp.eq.s32.totalorder %s28, 0
      %p238 = por %p236, %p237
      %p239 = scmp.ne.s32.totalorder %s227, %s228
      %p240 = scmp.eq.s32.totalorder %s29, 1
      %p241 = por %p239, %p240
      %p243 = scmp.ne.s32.totalorder %s228, %s242
      %p244 = scmp.eq.s32.totalorder %s29, 0
      %p245 = por %p243, %p244
      %s247 = sadd.s32 %s246, 1
      %p250 = scmp.eq.s32.totalorder %s23, 1
      %p251 = scmp.ne.s32.totalorder %s246, %s248
      %p252 = scmp.eq.s32.totalorder %s23, 0
      %p253 = por %p251, %p252
      %p254 = scmp.ne.s32.totalorder %s246, %s248
      %p255 = scmp.eq.s32.totalorder %s28, 1
      %p256 = por %p254, %p255
      %p257 = scmp.ne.s32.totalorder %s248, %s249
      %p258 = scmp.eq.s32.totalorder %s28, 0
      %p259 = por %p257, %p258
      %p260 = scmp.ne.s32.totalorder %s248, %s249
      %p261 = scmp.eq.s32.totalorder %s29, 1
      %p262 = por %p260, %p261
      %p264 = scmp.ne.s32.totalorder %s249, %s263
      %p265 = scmp.eq.s32.totalorder %s29, 0
      %p266 = por %p264, %p265
      %s268 = sadd.s32 %s267, 1
      %p271 = scmp.eq.s32.totalorder %s23, 1
      %p272 = scmp.ne.s32.totalorder %s267, %s269
      %p273 = scmp.eq.s32.totalorder %s23, 0
      %p274 = por %p272, %p273
      %p275 = scmp.ne.s32.totalorder %s267, %s269
      %p276 = scmp.eq.s32.totalorder %s28, 1
      %p277 = por %p275, %p276
      %p278 = scmp.ne.s32.totalorder %s269, %s270
      %p279 = scmp.eq.s32.totalorder %s28, 0
      %p280 = por %p278, %p279
      %p281 = scmp.ne.s32.totalorder %s269, %s270
      %p282 = scmp.eq.s32.totalorder %s29, 1
      %p283 = por %p281, %p282
      %p285 = scmp.ne.s32.totalorder %s270, %s284
      %p286 = scmp.eq.s32.totalorder %s29, 0
      %p287 = por %p285, %p286
      %s289 = sadd.s32 %s288, 1
      %p292 = scmp.eq.s32.totalorder %s23, 1
      %p293 = scmp.ne.s32.totalorder %s288, %s290
      %p294 = scmp.eq.s32.totalorder %s23, 0
      %p295 = por %p293, %p294
      %p296 = scmp.ne.s32.totalorder %s288, %s290
      %p297 = scmp.eq.s32.totalorder %s28, 1
      %p298 = por %p296, %p297
      %p299 = scmp.ne.s32.totalorder %s290, %s291
      %p300 = scmp.eq.s32.totalorder %s28, 0
      %p301 = por %p299, %p300
      %p302 = scmp.ne.s32.totalorder %s290, %s291
      %p303 = scmp.eq.s32.totalorder %s29, 1
      %p304 = por %p302, %p303
      %p306 = scmp.ne.s32.totalorder %s291, %s305
      %p307 = scmp.eq.s32.totalorder %s29, 0
      %p308 = por %p306, %p307
      %s310 = sadd.s32 %s309, 1
      %p313 = scmp.eq.s32.totalorder %s23, 1
      %p314 = scmp.ne.s32.totalorder %s309, %s311
      %p315 = scmp.eq.s32.totalorder %s23, 0
      %p316 = por %p314, %p315
      %p317 = scmp.ne.s32.totalorder %s309, %s311
      %p318 = scmp.eq.s32.totalorder %s28, 1
      %p319 = por %p317, %p318
      %p320 = scmp.ne.s32.totalorder %s311, %s312
      %p321 = scmp.eq.s32.totalorder %s28, 0
      %p322 = por %p320, %p321
      %p323 = scmp.ne.s32.totalorder %s311, %s312
      %p324 = scmp.eq.s32.totalorder %s29, 1
      %p325 = por %p323, %p324
      %p327 = scmp.ne.s32.totalorder %s312, %s326
      %p328 = scmp.eq.s32.totalorder %s29, 0
      %p329 = por %p327, %p328
      %s330 = ssub.s32 %s23, %s30
      %p331 = scmp.eq.s32.totalorder %s330, 0
      %s333 = sadd.s32 %s332, 1
      %s334 = scalar_select %p331, %s332, %s333
      %p337 = pneg %p331
      %p338 = scmp.eq.s32.totalorder %s23, 1
      %p339 = por %p337, %p338
      %p340 = scmp.ne.s32.totalorder %s332, %s335
      %p341 = scmp.eq.s32.totalorder %s23, 0
      %p342 = por %p340, %p341
      %p343 = scmp.ne.s32.totalorder %s332, %s335
      %p344 = scmp.eq.s32.totalorder %s28, 1
      %p345 = por %p343, %p344
      %p346 = scmp.ne.s32.totalorder %s335, %s336
      %p347 = scmp.eq.s32.totalorder %s28, 0
      %p348 = por %p346, %p347
      %p349 = scmp.ne.s32.totalorder %s335, %s336
      %p350 = scmp.eq.s32.totalorder %s29, 1
      %p351 = por %p349, %p350
      %p353 = scmp.ne.s32.totalorder %s336, %s352
      %p354 = scmp.eq.s32.totalorder %s29, 0
      %p355 = por %p353, %p354
      %p356 = scmp.le.s32.totalorder 1, %s23
      %p357 = scmp.lt.s32.totalorder %s23, 3
      %p358 = pnand %p356, %p357
      %p359 = pneg %p358
      // Predicated region
      $region9: #{tpu_custom_call.1} parent=5 // pred_check
        _
      $region10: #{tpu_custom_call.1} parent=5 // pred_check_branch
        %361 = sbr.rel (%p358) target = $region12
      $region11: #{tpu_custom_call.1} parent=5 // pred_region
        %s362 = ssub.s32 %s23, 1
        // Predicated region
        $region13: #{tpu_custom_call.1} parent=11 // pred_check
          %p363 = pneg %p70
        $region14: #{tpu_custom_call.1} parent=11 // pred_check_branch
          %365 = sbr.rel (%p363) target = $region16
        $region15: #{tpu_custom_call.1} parent=11 // pred_region
          _
        $region16: #{tpu_custom_call.1} parent=11 // pred_fallthru
          _
        // Predicated region
        $region17: #{tpu_custom_call.1} parent=11 // pred_check
          %p366 = pneg %p91
        $region18: #{tpu_custom_call.1} parent=11 // pred_check_branch
          %368 = sbr.rel (%p366) target = $region20
        $region19: #{tpu_custom_call.1} parent=11 // pred_region
          _
        $region20: #{tpu_custom_call.1} parent=11 // pred_fallthru
          _
        // Predicated region
        $region21: #{tpu_custom_call.1} parent=11 // pred_check
          %p369 = pneg %p112
        $region22: #{tpu_custom_call.1} parent=11 // pred_check_branch
          %371 = sbr.rel (%p369) target = $region24
        $region23: #{tpu_custom_call.1} parent=11 // pred_region
          _
        $region24: #{tpu_custom_call.1} parent=11 // pred_fallthru
          _
        // Predicated region
        $region25: #{tpu_custom_call.1} parent=11 // pred_check
          %p372 = pneg %p133
        $region26: #{tpu_custom_call.1} parent=11 // pred_check_branch
          %374 = sbr.rel (%p372) target = $region28
        $region27: #{tpu_custom_call.1} parent=11 // pred_region
          _
        $region28: #{tpu_custom_call.1} parent=11 // pred_fallthru
          _
        // Predicated region
        $region29: #{tpu_custom_call.1} parent=11 // pred_check
          %p375 = pneg %p154
        $region30: #{tpu_custom_call.1} parent=11 // pred_check_branch
          %377 = sbr.rel (%p375) target = $region32
        $region31: #{tpu_custom_call.1} parent=11 // pred_region
          _
        $region32: #{tpu_custom_call.1} parent=11 // pred_fallthru
          _
        // Predicated region
        $region33: #{tpu_custom_call.1} parent=11 // pred_check
          %p378 = pneg %p175
        $region34: #{tpu_custom_call.1} parent=11 // pred_check_branch
          %380 = sbr.rel (%p378) target = $region36
        $region35: #{tpu_custom_call.1} parent=11 // pred_region
          _
        $region36: #{tpu_custom_call.1} parent=11 // pred_fallthru
          _
        // Predicated region
        $region37: #{tpu_custom_call.1} parent=11 // pred_check
          %p381 = pneg %p196
        $region38: #{tpu_custom_call.1} parent=11 // pred_check_branch
          %383 = sbr.rel (%p381) target = $region40
        $region39: #{tpu_custom_call.1} parent=11 // pred_region
          _
        $region40: #{tpu_custom_call.1} parent=11 // pred_fallthru
          _
        // Predicated region
        $region41: #{tpu_custom_call.1} parent=11 // pred_check
          %p384 = pneg %p217
        $region42: #{tpu_custom_call.1} parent=11 // pred_check_branch
          %386 = sbr.rel (%p384) target = $region44
        $region43: #{tpu_custom_call.1} parent=11 // pred_region
          _
        $region44: #{tpu_custom_call.1} parent=11 // pred_fallthru
          _
        // Predicated region
        $region45: #{tpu_custom_call.1} parent=11 // pred_check
          %p387 = pneg %p238
        $region46: #{tpu_custom_call.1} parent=11 // pred_check_branch
          %389 = sbr.rel (%p387) target = $region48
        $region47: #{tpu_custom_call.1} parent=11 // pred_region
          _
        $region48: #{tpu_custom_call.1} parent=11 // pred_fallthru
          _
        // Predicated region
        $region49: #{tpu_custom_call.1} parent=11 // pred_check
          %p390 = pneg %p259
        $region50: #{tpu_custom_call.1} parent=11 // pred_check_branch
          %392 = sbr.rel (%p390) target = $region52
        $region51: #{tpu_custom_call.1} parent=11 // pred_region
          _
        $region52: #{tpu_custom_call.1} parent=11 // pred_fallthru
          _
        // Predicated region
        $region53: #{tpu_custom_call.1} parent=11 // pred_check
          %p393 = pneg %p280
        $region54: #{tpu_custom_call.1} parent=11 // pred_check_branch
          %395 = sbr.rel (%p393) target = $region56
        $region55: #{tpu_custom_call.1} parent=11 // pred_region
          _
        $region56: #{tpu_custom_call.1} parent=11 // pred_fallthru
          _
        // Predicated region
        $region57: #{tpu_custom_call.1} parent=11 // pred_check
          %p396 = pneg %p301
        $region58: #{tpu_custom_call.1} parent=11 // pred_check_branch
          %398 = sbr.rel (%p396) target = $region60
        $region59: #{tpu_custom_call.1} parent=11 // pred_region
          _
        $region60: #{tpu_custom_call.1} parent=11 // pred_fallthru
          _
        // Predicated region
        $region61: #{tpu_custom_call.1} parent=11 // pred_check
          %p399 = pneg %p322
        $region62: #{tpu_custom_call.1} parent=11 // pred_check_branch
          %401 = sbr.rel (%p399) target = $region64
        $region63: #{tpu_custom_call.1} parent=11 // pred_region
          _
        $region64: #{tpu_custom_call.1} parent=11 // pred_fallthru
          _
      $region12: #{tpu_custom_call.1} parent=5 // pred_fallthru
        _
      %p402 = scmp.lt.s32.totalorder %s23, 2
      // Predicated region
      $region65: #{tpu_custom_call.1} parent=5 // pred_check
        %p403 = pneg %p402
      $region66: #{tpu_custom_call.1} parent=5 // pred_check_branch
        %405 = sbr.rel (%p403) target = $region68
      $region67: #{tpu_custom_call.1} parent=5 // pred_region
        // Predicated region
        $region69: #{tpu_custom_call.1} parent=67 // pred_check
          %p406 = pneg %p43
        $region70: #{tpu_custom_call.1} parent=67 // pred_check_branch
          %408 = sbr.rel (%p406) target = $region72
        $region71: #{tpu_custom_call.1} parent=67 // pred_region
          %p409 = scmp.lt.s32.totalorder %s23, 1
          %s410 = scalar_select %p409, %s23, 1
          %s411 = smul.addr %s410, 8
          %s412 = scalar_lea.vmem %s0, %s411
        $region72: #{tpu_custom_call.1} parent=67 // pred_fallthru
          _
      $region68: #{tpu_custom_call.1} parent=5 // pred_fallthru
        _
      %p413 = scmp.le.s32.totalorder 1, %s23
      %p414 = scmp.lt.s32.totalorder %s23, 3
      %p415 = pnand %p413, %p414
      %p416 = pneg %p415
      // Predicated region
      $region73: #{tpu_custom_call.1} parent=5 // pred_check
        _
      $region74: #{tpu_custom_call.1} parent=5 // pred_check_branch
        %418 = sbr.rel (%p415) target = $region76
      $region75: #{tpu_custom_call.1} parent=5 // pred_region
        %s419 = ssub.s32 %s23, 1
        %p420 = scmp.lt.s32.totalorder %s28, 1
        %s421 = scalar_select %p420, %s28, 1
        %s422 = smul.addr %s421, 8
        %s423 = scalar_lea.vmem %s0, %s422
        %p424 = pneg %p49
        %p425 = pneg %p46
        %p426 = pneg %p70
        %p427 = pneg %p67
        %p428 = pneg %p91
        %p429 = pneg %p88
        %p430 = pneg %p112
        %p431 = pneg %p109
        %p432 = pneg %p133
        %p433 = pneg %p130
        %p434 = pneg %p154
        %p435 = pneg %p151
        %p436 = pneg %p175
        %p437 = pneg %p172
        %p438 = pneg %p196
        %p439 = pneg %p193
        %p440 = pneg %p217
        %p441 = pneg %p214
        %p442 = pneg %p238
        %p443 = pneg %p235
        %p444 = pneg %p259
        %p445 = pneg %p256
        %p446 = pneg %p280
        %p447 = pneg %p277
        %p448 = pneg %p301
        %p449 = pneg %p298
        %p450 = pneg %p322
        %p451 = pneg %p319
        %p452 = pneg %p348
        %p453 = pneg %p345
        %s454 = sand.u32 %s335, 1
        %s455 = scalar_lea.sflag [#allocation3], %s454
        %s456 = sand.u32 %s335, 1
        %s457 = smul.addr %s456, 8
        %s458 = scalar_lea.vmem [#allocation2], %s457
        %p459 = scmp.lt.s32.totalorder %s28, 1
        %s460 = scalar_select %p459, %s28, 1
        %s461 = smul.addr %s460, 8
        %s462 = scalar_lea.vmem %s0, %s461
        %v463 = vld [vmem:[%s462] sm:$0xff]
        %v464 = vld [vmem:[%s2] sm:$0x1]
        %v465 = vld [vmem:[%s3] sm:$0x1]
        %vm466 = vcmask 261120
        %v467 = vsel %vm466, %v463, 0.0
        %468 = vadd.xlane.f32.xlu0 %v467
        %v469 = vpop.xlane.xlu0 %468
        %v470 = vrcp.pop 32.0
        %v471 = vmul.f32 %v469, %v470
        %v472 = vsub.f32 %v463, %v471
        %v473 = vmul.f32 %v472, %v472
        %v474 = vsel %vm466, %v473, 0.0
        %475 = vadd.xlane.f32.xlu0 %v474
        %v476 = vpop.xlane.xlu0 %475
        %v477 = vmul.f32 %v476, %v470
        %v478 = vadd.f32 %v477, 1e-05
        %v479 = vrsqrt.pop %v478
        %v480 = vmul.f32 %v472, %v479
        %v482 = vlaneseq
        %v483 = vshrl.u32 %v482, 7
        %v484 = vsub.s32 0, %v483
        %v485 = vrot.slane %v464, %v484
        %v487 = vmul.f32 %v480, %v485
        %v489 = vlaneseq
        %v490 = vshrl.u32 %v489, 7
        %v491 = vsub.s32 0, %v490
        %v492 = vrot.slane %v465, %v491
        %v494 = vadd.f32 %v487, %v492
        %v495 = vld [vmem:[%s4] sm:$0xff]
        %v496 = vld [vmem:[%s4 + $0x8] sm:$0xff]
        %v497 = vld [vmem:[%s4 + $0x10] sm:$0xff]
        %v498 = vld [vmem:[%s4 + $0x18] sm:$0xff]
        %v499 = vld [vmem:[%s5] sm:$0x1]
        %v501 = vlaneseq
        %v502 = vshrl.u32 %v501, 7
        %v503 = vsub.s32 0, %v502
        %v504 = vrot.slane %v499, %v503
        %v507 = vsel %vm466, %v494, 0
        %509 = vmatprep.subr.mxu0 0.0
        %510 = vmatpush1.msra.mxu0 %v495
        %511 = vmatprep.subr.mxu0 0.0
        %512 = vmatpush1.msra.mxu0 %v496
        %513 = vmatprep.subr.mxu0 0.0
        %514 = vmatpush1.msra.mxu0 %v497
        %515 = vmatprep.subr.mxu0 0.0
        %516 = vmatpush1.msra.mxu0 %v498
        %517 = vmatprep.subr.mxu0 0.0
        %518 = vmatpush1.msra.mxu0 0.0
        %519 = vmatprep.subr.mxu0 0.0
        %520 = vmatpush1.msra.mxu0 0.0
        %521 = vmatprep.subr.mxu0 0.0
        %522 = vmatpush1.msra.mxu0 0.0
        %523 = vmatprep.subr.mxu0 0.0
        %524 = vmatpush1.msra.mxu0 0.0
        %525 = vmatprep.subr.mxu0 0.0
        %526 = vmatpush1.msra.mxu0 0.0
        %527 = vmatprep.subr.mxu0 0.0
        %528 = vmatpush1.msra.mxu0 0.0
        %529 = vmatprep.subr.mxu0 0.0
        %530 = vmatpush1.msra.mxu0 0.0
        %531 = vmatprep.subr.mxu0 0.0
        %532 = vmatpush1.msra.mxu0 0.0
        %533 = vmatprep.subr.mxu0 0.0
        %534 = vmatpush1.msra.mxu0 0.0
        %535 = vmatprep.subr.mxu0 0.0
        %536 = vmatpush1.msra.mxu0 0.0
        %537 = vmatprep.subr.mxu0 0.0
        %538 = vmatpush1.msra.mxu0 0.0
        %539 = vmatprep.subr.mxu0 0.0
        %540 = vmatpush1.msra.mxu0 0.0
        %541 = vmatprep.subr.mxu0 0.0
        %542 = vmatpush1.msra.mxu0 0.0
        %543 = vmatprep.subr.mxu0 0.0
        %544 = vmatpush1.msra.mxu0 0.0
        %545 = vmatprep.subr.mxu0 0.0
        %546 = vmatpush1.msra.mxu0 0.0
        %547 = vmatprep.subr.mxu0 0.0
        %548 = vmatpush1.msra.mxu0 0.0
        %549 = vmatprep.subr.mxu0 0.0
        %550 = vmatpush1.msra.mxu0 0.0
        %551 = vmatprep.subr.mxu0 0.0
        %552 = vmatpush1.msra.mxu0 0.0
        %553 = vmatprep.subr.mxu0 0.0
        %554 = vmatpush1.msra.mxu0 0.0
        %555 = vmatprep.subr.mxu0 0.0
        %556 = vmatpush1.msra.mxu0 0.0
        %557 = vmatprep.subr.mxu0 0.0
        %558 = vmatpush1.msra.mxu0 0.0
        %559 = vmatprep.subr.mxu0 0.0
        %560 = vmatpush1.msra.mxu0 0.0
        %561 = vmatprep.subr.mxu0 0.0
        %562 = vmatpush1.msra.mxu0 0.0
        %563 = vmatprep.subr.mxu0 0.0
        %564 = vmatpush1.msra.mxu0 0.0
        %565 = vmatprep.subr.mxu0 0.0
        %566 = vmatpush1.msra.mxu0 0.0
        %567 = vmatprep.subr.mxu0 0.0
        %568 = vmatpush1.msra.mxu0 0.0
        %569 = vmatprep.subr.mxu0 0.0
        %570 = vmatpush1.msra.mxu0 0.0
        %571 = vmatprep.subr.mxu0 0.0
        %572 = vmatpush1.msra.mxu0 0.0
        %573 = vmatprep.mubr.f32.mxu0 0.0
        %574 = vmatmul.mubr.f32.gmra.mrb[0].mxu0 %v507
        %v575 = vpop.f32.mrb[0].mxu0
        %v576 = vadd.f32 %v504, %v575
        %v577 = vpop.f32.mrb[0].mxu0
        %578 = vdwg.mxu0
        %v579 = vld [vmem:[%s1] sm:$0xff]
        %581 = vrot.lane.b32.xlu0 %v576, 96
        %v582 = vpop.permute.xlu0 %581
        %vm583 = vcmask 64512
        %v584 = vsel %vm583, %v576, 0
        %v586 = vsel %vm583, %v582, 0
        %588 = vmatprep.subr.mxu0 0.0
        %589 = vmatpush1.xpose.msra.mxu0 %v586
        %590 = vmatprep.subr.mxu0 0.0
        %591 = vmatpush1.xpose.msra.mxu0 0.0
        %592 = vmatprep.subr.mxu0 0.0
        %593 = vmatpush1.xpose.msra.mxu0 0.0
        %594 = vmatprep.subr.mxu0 0.0
        %595 = vmatpush1.xpose.msra.mxu0 0.0
        %596 = vmatprep.subr.mxu0 0.0
        %597 = vmatpush1.xpose.msra.mxu0 0.0
        %598 = vmatprep.subr.mxu0 0.0
        %599 = vmatpush1.xpose.msra.mxu0 0.0
        %600 = vmatprep.subr.mxu0 0.0
        %601 = vmatpush1.xpose.msra.mxu0 0.0
        %602 = vmatprep.subr.mxu0 0.0
        %603 = vmatpush1.xpose.msra.mxu0 0.0
        %604 = vmatprep.subr.mxu0 0.0
        %605 = vmatpush1.xpose.msra.mxu0 0.0
        %606 = vmatprep.subr.mxu0 0.0
        %607 = vmatpush1.xpose.msra.mxu0 0.0
        %608 = vmatprep.subr.mxu0 0.0
        %609 = vmatpush1.xpose.msra.mxu0 0.0
        %610 = vmatprep.subr.mxu0 0.0
        %611 = vmatpush1.xpose.msra.mxu0 0.0
        %612 = vmatprep.subr.mxu0 0.0
        %613 = vmatpush1.xpose.msra.mxu0 0.0
        %614 = vmatprep.subr.mxu0 0.0
        %615 = vmatpush1.xpose.msra.mxu0 0.0
        %616 = vmatprep.subr.mxu0 0.0
        %617 = vmatpush1.xpose.msra.mxu0 0.0
        %618 = vmatprep.subr.mxu0 0.0
        %619 = vmatpush1.xpose.msra.mxu0 0.0
        %620 = vmatprep.subr.mxu0 0.0
        %621 = vmatpush1.xpose.msra.mxu0 0.0
        %622 = vmatprep.subr.mxu0 0.0
        %623 = vmatpush1.xpose.msra.mxu0 0.0
        %624 = vmatprep.subr.mxu0 0.0
        %625 = vmatpush1.xpose.msra.mxu0 0.0
        %626 = vmatprep.subr.mxu0 0.0
        %627 = vmatpush1.xpose.msra.mxu0 0.0
        %628 = vmatprep.subr.mxu0 0.0
        %629 = vmatpush1.xpose.msra.mxu0 0.0
        %630 = vmatprep.subr.mxu0 0.0
        %631 = vmatpush1.xpose.msra.mxu0 0.0
        %632 = vmatprep.subr.mxu0 0.0
        %633 = vmatpush1.xpose.msra.mxu0 0.0
        %634 = vmatprep.subr.mxu0 0.0
        %635 = vmatpush1.xpose.msra.mxu0 0.0
        %636 = vmatprep.subr.mxu0 0.0
        %637 = vmatpush1.xpose.msra.mxu0 0.0
        %638 = vmatprep.subr.mxu0 0.0
        %639 = vmatpush1.xpose.msra.mxu0 0.0
        %640 = vmatprep.subr.mxu0 0.0
        %641 = vmatpush1.xpose.msra.mxu0 0.0
        %642 = vmatprep.subr.mxu0 0.0
        %643 = vmatpush1.xpose.msra.mxu0 0.0
        %644 = vmatprep.subr.mxu0 0.0
        %645 = vmatpush1.xpose.msra.mxu0 0.0
        %646 = vmatprep.subr.mxu0 0.0
        %647 = vmatpush1.xpose.msra.mxu0 0.0
        %648 = vmatprep.subr.mxu0 0.0
        %649 = vmatpush1.xpose.msra.mxu0 0.0
        %650 = vmatprep.subr.mxu0 0.0
        %651 = vmatpush1.xpose.msra.mxu0 0.0
        %652 = vmatprep.mubr.f32.mxu0 0.0
        %653 = vmatmul.mubr.f32.gmra.mrb[0].mxu0 %v584
        %v654 = vpop.f32.mrb[0].mxu0
        %v655 = vadd.f32 %v579, %v654
        %v656 = vpop.f32.mrb[0].mxu0
        %657 = vdwg.mxu0
        %v658 = vsel %vm583, %v655, -inf
        %659 = vmax.xlane.f32.xlu0 %v658
        %v660 = vpop.xlane.xlu0 %659
        %v661 = vsub.f32 %v655, %v660
        %v662 = vmul.f32 %v661, 1.442695
        %v663 = vpow.pop %v662
        %v664 = vsel %vm583, %v663, 0.0
        %665 = vadd.xlane.f32.xlu0 %v664
        %v666 = vpop.xlane.xlu0 %665
        %v667 = vrcp.pop %v666
        %v668 = vmul.f32 %v663, %v667
        %669 = vrot.lane.b32.xlu0 %v576, 64
        %v670 = vpop.permute.xlu0 %669
        %v673 = vsel %vm583, %v668, 0
        %675 = vmatprep.subr.mxu0 0.0
        %676 = vmatpush1.msra.mxu0 %v670
        %677 = vmatprep.subr.mxu0 0.0
        %678 = vmatpush1.msra.mxu0 0.0
        %679 = vmatprep.subr.mxu0 0.0
        %680 = vmatpush1.msra.mxu0 0.0
        %681 = vmatprep.subr.mxu0 0.0
        %682 = vmatpush1.msra.mxu0 0.0
        %683 = vmatprep.subr.mxu0 0.0
        %684 = vmatpush1.msra.mxu0 0.0
        %685 = vmatprep.subr.mxu0 0.0
        %686 = vmatpush1.msra.mxu0 0.0
        %687 = vmatprep.subr.mxu0 0.0
        %688 = vmatpush1.msra.mxu0 0.0
        %689 = vmatprep.subr.mxu0 0.0
        %690 = vmatpush1.msra.mxu0 0.0
        %691 = vmatprep.subr.mxu0 0.0
        %692 = vmatpush1.msra.mxu0 0.0
        %693 = vmatprep.subr.mxu0 0.0
        %694 = vmatpush1.msra.mxu0 0.0
        %695 = vmatprep.subr.mxu0 0.0
        %696 = vmatpush1.msra.mxu0 0.0
        %697 = vmatprep.subr.mxu0 0.0
        %698 = vmatpush1.msra.mxu0 0.0
        %699 = vmatprep.subr.mxu0 0.0
        %700 = vmatpush1.msra.mxu0 0.0
        %701 = vmatprep.subr.mxu0 0.0
        %702 = vmatpush1.msra.mxu0 0.0
        %703 = vmatprep.subr.mxu0 0.0
        %704 = vmatpush1.msra.mxu0 0.0
        %705 = vmatprep.subr.mxu0 0.0
        %706 = vmatpush1.msra.mxu0 0.0
        %707 = vmatprep.subr.mxu0 0.0
        %708 = vmatpush1.msra.mxu0 0.0
        %709 = vmatprep.subr.mxu0 0.0
        %710 = vmatpush1.msra.mxu0 0.0
        %711 = vmatprep.subr.mxu0 0.0
        %712 = vmatpush1.msra.mxu0 0.0
        %713 = vmatprep.subr.mxu0 0.0
        %714 = vmatpush1.msra.mxu0 0.0
        %715 = vmatprep.subr.mxu0 0.0
        %716 = vmatpush1.msra.mxu0 0.0
        %717 = vmatprep.subr.mxu0 0.0
        %718 = vmatpush1.msra.mxu0 0.0
        %719 = vmatprep.subr.mxu0 0.0
        %720 = vmatpush1.msra.mxu0 0.0
        %721 = vmatprep.subr.mxu0 0.0
        %722 = vmatpush1.msra.mxu0 0.0
        %723 = vmatprep.subr.mxu0 0.0
        %724 = vmatpush1.msra.mxu0 0.0
        %725 = vmatprep.subr.mxu0 0.0
        %726 = vmatpush1.msra.mxu0 0.0
        %727 = vmatprep.subr.mxu0 0.0
        %728 = vmatpush1.msra.mxu0 0.0
        %729 = vmatprep.subr.mxu0 0.0
        %730 = vmatpush1.msra.mxu0 0.0
        %731 = vmatprep.subr.mxu0 0.0
        %732 = vmatpush1.msra.mxu0 0.0
        %733 = vmatprep.subr.mxu0 0.0
        %734 = vmatpush1.msra.mxu0 0.0
        %735 = vmatprep.subr.mxu0 0.0
        %736 = vmatpush1.msra.mxu0 0.0
        %737 = vmatprep.subr.mxu0 0.0
        %738 = vmatpush1.msra.mxu0 0.0
        %739 = vmatprep.mubr.f32.mxu0 0.0
        %740 = vmatmul.mubr.f32.gmra.mrb[0].mxu0 %v673
        %v741 = vpop.f32.mrb[0].mxu0
        %v742 = vadd.f32 0.0, %v741
        %v743 = vpop.f32.mrb[0].mxu0
        %744 = vdwg.mxu0
        %745 = vrot.lane.b32.xlu0 %v576, 120
        %v746 = vpop.permute.xlu0 %745
        %747 = vrot.lane.b32.xlu0 %v576, 88
        %v748 = vpop.permute.xlu0 %747
        %v749 = vsel %vm583, %v746, 0
        %v751 = vsel %vm583, %v748, 0
        %753 = vmatprep.subr.mxu0 0.0
        %754 = vmatpush1.xpose.msra.mxu0 %v751
        %755 = vmatprep.subr.mxu0 0.0
        %756 = vmatpush1.xpose.msra.mxu0 0.0
        %757 = vmatprep.subr.mxu0 0.0
        %758 = vmatpush1.xpose.msra.mxu0 0.0
        %759 = vmatprep.subr.mxu0 0.0
        %760 = vmatpush1.xpose.msra.mxu0 0.0
        %761 = vmatprep.subr.mxu0 0.0
        %762 = vmatpush1.xpose.msra.mxu0 0.0
        %763 = vmatprep.subr.mxu0 0.0
        %764 = vmatpush1.xpose.msra.mxu0 0.0
        %765 = vmatprep.subr.mxu0 0.0
        %766 = vmatpush1.xpose.msra.mxu0 0.0
        %767 = vmatprep.subr.mxu0 0.0
        %768 = vmatpush1.xpose.msra.mxu0 0.0
        %769 = vmatprep.subr.mxu0 0.0
        %770 = vmatpush1.xpose.msra.mxu0 0.0
        %771 = vmatprep.subr.mxu0 0.0
        %772 = vmatpush1.xpose.msra.mxu0 0.0
        %773 = vmatprep.subr.mxu0 0.0
        %774 = vmatpush1.xpose.msra.mxu0 0.0
        %775 = vmatprep.subr.mxu0 0.0
        %776 = vmatpush1.xpose.msra.mxu0 0.0
        %777 = vmatprep.subr.mxu0 0.0
        %778 = vmatpush1.xpose.msra.mxu0 0.0
        %779 = vmatprep.subr.mxu0 0.0
        %780 = vmatpush1.xpose.msra.mxu0 0.0
        %781 = vmatprep.subr.mxu0 0.0
        %782 = vmatpush1.xpose.msra.mxu0 0.0
        %783 = vmatprep.subr.mxu0 0.0
        %784 = vmatpush1.xpose.msra.mxu0 0.0
        %785 = vmatprep.subr.mxu0 0.0
        %786 = vmatpush1.xpose.msra.mxu0 0.0
        %787 = vmatprep.subr.mxu0 0.0
        %788 = vmatpush1.xpose.msra.mxu0 0.0
        %789 = vmatprep.subr.mxu0 0.0
        %790 = vmatpush1.xpose.msra.mxu0 0.0
        %791 = vmatprep.subr.mxu0 0.0
        %792 = vmatpush1.xpose.msra.mxu0 0.0
        %793 = vmatprep.subr.mxu0 0.0
        %794 = vmatpush1.xpose.msra.mxu0 0.0
        %795 = vmatprep.subr.mxu0 0.0
        %796 = vmatpush1.xpose.msra.mxu0 0.0
        %797 = vmatprep.subr.mxu0 0.0
        %798 = vmatpush1.xpose.msra.mxu0 0.0
        %799 = vmatprep.subr.mxu0 0.0
        %800 = vmatpush1.xpose.msra.mxu0 0.0
        %801 = vmatprep.subr.mxu0 0.0
        %802 = vmatpush1.xpose.msra.mxu0 0.0
        %803 = vmatprep.subr.mxu0 0.0
        %804 = vmatpush1.xpose.msra.mxu0 0.0
        %805 = vmatprep.subr.mxu0 0.0
        %806 = vmatpush1.xpose.msra.mxu0 0.0
        %807 = vmatprep.subr.mxu0 0.0
        %808 = vmatpush1.xpose.msra.mxu0 0.0
        %809 = vmatprep.subr.mxu0 0.0
        %810 = vmatpush1.xpose.msra.mxu0 0.0
        %811 = vmatprep.subr.mxu0 0.0
        %812 = vmatpush1.xpose.msra.mxu0 0.0
        %813 = vmatprep.subr.mxu0 0.0
        %814 = vmatpush1.xpose.msra.mxu0 0.0
        %815 = vmatprep.subr.mxu0 0.0
        %816 = vmatpush1.xpose.msra.mxu0 0.0
        %817 = vmatprep.mubr.f32.mxu0 0.0
        %818 = vmatmul.mubr.f32.gmra.mrb[0].mxu0 %v749
        %v819 = vpop.f32.mrb[0].mxu0
        %v820 = vadd.f32 %v579, %v819
        %v821 = vpop.f32.mrb[0].mxu0
        %822 = vdwg.mxu0
        %v823 = vsel %vm583, %v820, -inf
        %824 = vmax.xlane.f32.xlu0 %v823
        %v825 = vpop.xlane.xlu0 %824
        %v826 = vsub.f32 %v820, %v825
        %v827 = vmul.f32 %v826, 1.442695
        %v828 = vpow.pop %v827
        %v829 = vsel %vm583, %v828, 0.0
        %830 = vadd.xlane.f32.xlu0 %v829
        %v831 = vpop.xlane.xlu0 %830
        %v832 = vrcp.pop %v831
        %v833 = vmul.f32 %v828, %v832
        %834 = vrot.lane.b32.xlu0 %v576, 56
        %v835 = vpop.permute.xlu0 %834
        %v838 = vsel %vm583, %v833, 0
        %840 = vmatprep.subr.mxu0 0.0
        %841 = vmatpush1.msra.mxu0 %v835
        %842 = vmatprep.subr.mxu0 0.0
        %843 = vmatpush1.msra.mxu0 0.0
        %844 = vmatprep.subr.mxu0 0.0
        %845 = vmatpush1.msra.mxu0 0.0
        %846 = vmatprep.subr.mxu0 0.0
        %847 = vmatpush1.msra.mxu0 0.0
        %848 = vmatprep.subr.mxu0 0.0
        %849 = vmatpush1.msra.mxu0 0.0
        %850 = vmatprep.subr.mxu0 0.0
        %851 = vmatpush1.msra.mxu0 0.0
        %852 = vmatprep.subr.mxu0 0.0
        %853 = vmatpush1.msra.mxu0 0.0
        %854 = vmatprep.subr.mxu0 0.0
        %855 = vmatpush1.msra.mxu0 0.0
        %856 = vmatprep.subr.mxu0 0.0
        %857 = vmatpush1.msra.mxu0 0.0
        %858 = vmatprep.subr.mxu0 0.0
        %859 = vmatpush1.msra.mxu0 0.0
        %860 = vmatprep.subr.mxu0 0.0
        %861 = vmatpush1.msra.mxu0 0.0
        %862 = vmatprep.subr.mxu0 0.0
        %863 = vmatpush1.msra.mxu0 0.0
        %864 = vmatprep.subr.mxu0 0.0
        %865 = vmatpush1.msra.mxu0 0.0
        %866 = vmatprep.subr.mxu0 0.0
        %867 = vmatpush1.msra.mxu0 0.0
        %868 = vmatprep.subr.mxu0 0.0
        %869 = vmatpush1.msra.mxu0 0.0
        %870 = vmatprep.subr.mxu0 0.0
        %871 = vmatpush1.msra.mxu0 0.0
        %872 = vmatprep.subr.mxu0 0.0
        %873 = vmatpush1.msra.mxu0 0.0
        %874 = vmatprep.subr.mxu0 0.0
        %875 = vmatpush1.msra.mxu0 0.0
        %876 = vmatprep.subr.mxu0 0.0
        %877 = vmatpush1.msra.mxu0 0.0
        %878 = vmatprep.subr.mxu0 0.0
        %879 = vmatpush1.msra.mxu0 0.0
        %880 = vmatprep.subr.mxu0 0.0
        %881 = vmatpush1.msra.mxu0 0.0
        %882 = vmatprep.subr.mxu0 0.0
        %883 = vmatpush1.msra.mxu0 0.0
        %884 = vmatprep.subr.mxu0 0.0
        %885 = vmatpush1.msra.mxu0 0.0
        %886 = vmatprep.subr.mxu0 0.0
        %887 = vmatpush1.msra.mxu0 0.0
        %888 = vmatprep.subr.mxu0 0.0
        %889 = vmatpush1.msra.mxu0 0.0
        %890 = vmatprep.subr.mxu0 0.0
        %891 = vmatpush1.msra.mxu0 0.0
        %892 = vmatprep.subr.mxu0 0.0
        %893 = vmatpush1.msra.mxu0 0.0
        %894 = vmatprep.subr.mxu0 0.0
        %895 = vmatpush1.msra.mxu0 0.0
        %896 = vmatprep.subr.mxu0 0.0
        %897 = vmatpush1.msra.mxu0 0.0
        %898 = vmatprep.subr.mxu0 0.0
        %899 = vmatpush1.msra.mxu0 0.0
        %900 = vmatprep.subr.mxu0 0.0
        %901 = vmatpush1.msra.mxu0 0.0
        %902 = vmatprep.subr.mxu0 0.0
        %903 = vmatpush1.msra.mxu0 0.0
        %904 = vmatprep.mubr.f32.mxu0 0.0
        %905 = vmatmul.mubr.f32.gmra.mrb[0].mxu0 %v838
        %v906 = vpop.f32.mrb[0].mxu0
        %v907 = vadd.f32 0.0, %v906
        %v908 = vpop.f32.mrb[0].mxu0
        %909 = vdwg.mxu0
        %910 = vrot.lane.b32.xlu0 %v576, 112
        %v911 = vpop.permute.xlu0 %910
        %912 = vrot.lane.b32.xlu0 %v576, 80
        %v913 = vpop.permute.xlu0 %912
        %v914 = vsel %vm583, %v911, 0
        %v916 = vsel %vm583, %v913, 0
        %918 = vmatprep.subr.mxu0 0.0
        %919 = vmatpush1.xpose.msra.mxu0 %v916
        %920 = vmatprep.subr.mxu0 0.0
        %921 = vmatpush1.xpose.msra.mxu0 0.0
        %922 = vmatprep.subr.mxu0 0.0
        %923 = vmatpush1.xpose.msra.mxu0 0.0
        %924 = vmatprep.subr.mxu0 0.0
        %925 = vmatpush1.xpose.msra.mxu0 0.0
        %926 = vmatprep.subr.mxu0 0.0
        %927 = vmatpush1.xpose.msra.mxu0 0.0
        %928 = vmatprep.subr.mxu0 0.0
        %929 = vmatpush1.xpose.msra.mxu0 0.0
        %930 = vmatprep.subr.mxu0 0.0
        %931 = vmatpush1.xpose.msra.mxu0 0.0
        %932 = vmatprep.subr.mxu0 0.0
        %933 = vmatpush1.xpose.msra.mxu0 0.0
        %934 = vmatprep.subr.mxu0 0.0
        %935 = vmatpush1.xpose.msra.mxu0 0.0
        %936 = vmatprep.subr.mxu0 0.0
        %937 = vmatpush1.xpose.msra.mxu0 0.0
        %938 = vmatprep.subr.mxu0 0.0
        %939 = vmatpush1.xpose.msra.mxu0 0.0
        %940 = vmatprep.subr.mxu0 0.0
        %941 = vmatpush1.xpose.msra.mxu0 0.0
        %942 = vmatprep.subr.mxu0 0.0
        %943 = vmatpush1.xpose.msra.mxu0 0.0
        %944 = vmatprep.subr.mxu0 0.0
        %945 = vmatpush1.xpose.msra.mxu0 0.0
        %946 = vmatprep.subr.mxu0 0.0
        %947 = vmatpush1.xpose.msra.mxu0 0.0
        %948 = vmatprep.subr.mxu0 0.0
        %949 = vmatpush1.xpose.msra.mxu0 0.0
        %950 = vmatprep.subr.mxu0 0.0
        %951 = vmatpush1.xpose.msra.mxu0 0.0
        %952 = vmatprep.subr.mxu0 0.0
        %953 = vmatpush1.xpose.msra.mxu0 0.0
        %954 = vmatprep.subr.mxu0 0.0
        %955 = vmatpush1.xpose.msra.mxu0 0.0
        %956 = vmatprep.subr.mxu0 0.0
        %957 = vmatpush1.xpose.msra.mxu0 0.0
        %958 = vmatprep.subr.mxu0 0.0
        %959 = vmatpush1.xpose.msra.mxu0 0.0
        %960 = vmatprep.subr.mxu0 0.0
        %961 = vmatpush1.xpose.msra.mxu0 0.0
        %962 = vmatprep.subr.mxu0 0.0
        %963 = vmatpush1.xpose.msra.mxu0 0.0
        %964 = vmatprep.subr.mxu0 0.0
        %965 = vmatpush1.xpose.msra.mxu0 0.0
        %966 = vmatprep.subr.mxu0 0.0
        %967 = vmatpush1.xpose.msra.mxu0 0.0
        %968 = vmatprep.subr.mxu0 0.0
        %969 = vmatpush1.xpose.msra.mxu0 0.0
        %970 = vmatprep.subr.mxu0 0.0
        %971 = vmatpush1.xpose.msra.mxu0 0.0
        %972 = vmatprep.subr.mxu0 0.0
        %973 = vmatpush1.xpose.msra.mxu0 0.0
        %974 = vmatprep.subr.mxu0 0.0
        %975 = vmatpush1.xpose.msra.mxu0 0.0
        %976 = vmatprep.subr.mxu0 0.0
        %977 = vmatpush1.xpose.msra.mxu0 0.0
        %978 = vmatprep.subr.mxu0 0.0
        %979 = vmatpush1.xpose.msra.mxu0 0.0
        %980 = vmatprep.subr.mxu0 0.0
        %981 = vmatpush1.xpose.msra.mxu0 0.0
        %982 = vmatprep.mubr.f32.mxu0 0.0
        %983 = vmatmul.mubr.f32.gmra.mrb[0].mxu0 %v914
        %v984 = vpop.f32.mrb[0].mxu0
        %v985 = vadd.f32 %v579, %v984
        %v986 = vpop.f32.mrb[0].mxu0
        %987 = vdwg.mxu0
        %v988 = vsel %vm583, %v985, -inf
        %989 = vmax.xlane.f32.xlu0 %v988
        %v990 = vpop.xlane.xlu0 %989
        %v991 = vsub.f32 %v985, %v990
        %v992 = vmul.f32 %v991, 1.442695
        %v993 = vpow.pop %v992
        %v994 = vsel %vm583, %v993, 0.0
        %995 = vadd.xlane.f32.xlu0 %v994
        %v996 = vpop.xlane.xlu0 %995
        %v997 = vrcp.pop %v996
        %v998 = vmul.f32 %v993, %v997
        %999 = vrot.lane.b32.xlu0 %v576, 48
        %v1000 = vpop.permute.xlu0 %999
        %v1003 = vsel %vm583, %v998, 0
        %1005 = vmatprep.subr.mxu0 0.0
        %1006 = vmatpush1.msra.mxu0 %v1000
        %1007 = vmatprep.subr.mxu0 0.0
        %1008 = vmatpush1.msra.mxu0 0.0
        %1009 = vmatprep.subr.mxu0 0.0
        %1010 = vmatpush1.msra.mxu0 0.0
        %1011 = vmatprep.subr.mxu0 0.0
        %1012 = vmatpush1.msra.mxu0 0.0
        %1013 = vmatprep.subr.mxu0 0.0
        %1014 = vmatpush1.msra.mxu0 0.0
        %1015 = vmatprep.subr.mxu0 0.0
        %1016 = vmatpush1.msra.mxu0 0.0
        %1017 = vmatprep.subr.mxu0 0.0
        %1018 = vmatpush1.msra.mxu0 0.0
        %1019 = vmatprep.subr.mxu0 0.0
        %1020 = vmatpush1.msra.mxu0 0.0
        %1021 = vmatprep.subr.mxu0 0.0
        %1022 = vmatpush1.msra.mxu0 0.0
        %1023 = vmatprep.subr.mxu0 0.0
        %1024 = vmatpush1.msra.mxu0 0.0
        %1025 = vmatprep.subr.mxu0 0.0
        %1026 = vmatpush1.msra.mxu0 0.0
        %1027 = vmatprep.subr.mxu0 0.0
        %1028 = vmatpush1.msra.mxu0 0.0
        %1029 = vmatprep.subr.mxu0 0.0
        %1030 = vmatpush1.msra.mxu0 0.0
        %1031 = vmatprep.subr.mxu0 0.0
        %1032 = vmatpush1.msra.mxu0 0.0
        %1033 = vmatprep.subr.mxu0 0.0
        %1034 = vmatpush1.msra.mxu0 0.0
        %1035 = vmatprep.subr.mxu0 0.0
        %1036 = vmatpush1.msra.mxu0 0.0
        %1037 = vmatprep.subr.mxu0 0.0
        %1038 = vmatpush1.msra.mxu0 0.0
        %1039 = vmatprep.subr.mxu0 0.0
        %1040 = vmatpush1.msra.mxu0 0.0
        %1041 = vmatprep.subr.mxu0 0.0
        %1042 = vmatpush1.msra.mxu0 0.0
        %1043 = vmatprep.subr.mxu0 0.0
        %1044 = vmatpush1.msra.mxu0 0.0
        %1045 = vmatprep.subr.mxu0 0.0
        %1046 = vmatpush1.msra.mxu0 0.0
        %1047 = vmatprep.subr.mxu0 0.0
        %1048 = vmatpush1.msra.mxu0 0.0
        %1049 = vmatprep.subr.mxu0 0.0
        %1050 = vmatpush1.msra.mxu0 0.0
        %1051 = vmatprep.subr.mxu0 0.0
        %1052 = vmatpush1.msra.mxu0 0.0
        %1053 = vmatprep.subr.mxu0 0.0
        %1054 = vmatpush1.msra.mxu0 0.0
        %1055 = vmatprep.subr.mxu0 0.0
        %1056 = vmatpush1.msra.mxu0 0.0
        %1057 = vmatprep.subr.mxu0 0.0
        %1058 = vmatpush1.msra.mxu0 0.0
        %1059 = vmatprep.subr.mxu0 0.0
        %1060 = vmatpush1.msra.mxu0 0.0
        %1061 = vmatprep.subr.mxu0 0.0
        %1062 = vmatpush1.msra.mxu0 0.0
        %1063 = vmatprep.subr.mxu0 0.0
        %1064 = vmatpush1.msra.mxu0 0.0
        %1065 = vmatprep.subr.mxu0 0.0
        %1066 = vmatpush1.msra.mxu0 0.0
        %1067 = vmatprep.subr.mxu0 0.0
        %1068 = vmatpush1.msra.mxu0 0.0
        %1069 = vmatprep.mubr.f32.mxu0 0.0
        %1070 = vmatmul.mubr.f32.gmra.mrb[0].mxu0 %v1003
        %v1071 = vpop.f32.mrb[0].mxu0
        %v1072 = vadd.f32 0.0, %v1071
        %v1073 = vpop.f32.mrb[0].mxu0
        %1074 = vdwg.mxu0
        %1075 = vrot.lane.b32.xlu0 %v576, 104
        %v1076 = vpop.permute.xlu0 %1075
        %1077 = vrot.lane.b32.xlu0 %v576, 72
        %v1078 = vpop.permute.xlu0 %1077
        %v1079 = vsel %vm583, %v1076, 0
        %v1081 = vsel %vm583, %v1078, 0
        %1083 = vmatprep.subr.mxu0 0.0
        %1084 = vmatpush1.xpose.msra.mxu0 %v1081
        %1085 = vmatprep.subr.mxu0 0.0
        %1086 = vmatpush1.xpose.msra.mxu0 0.0
        %1087 = vmatprep.subr.mxu0 0.0
        %1088 = vmatpush1.xpose.msra.mxu0 0.0
        %1089 = vmatprep.subr.mxu0 0.0
        %1090 = vmatpush1.xpose.msra.mxu0 0.0
        %1091 = vmatprep.subr.mxu0 0.0
        %1092 = vmatpush1.xpose.msra.mxu0 0.0
        %1093 = vmatprep.subr.mxu0 0.0
        %1094 = vmatpush1.xpose.msra.mxu0 0.0
        %1095 = vmatprep.subr.mxu0 0.0
        %1096 = vmatpush1.xpose.msra.mxu0 0.0
        %1097 = vmatprep.subr.mxu0 0.0
        %1098 = vmatpush1.xpose.msra.mxu0 0.0
        %1099 = vmatprep.subr.mxu0 0.0
        %1100 = vmatpush1.xpose.msra.mxu0 0.0
        %1101 = vmatprep.subr.mxu0 0.0
        %1102 = vmatpush1.xpose.msra.mxu0 0.0
        %1103 = vmatprep.subr.mxu0 0.0
        %1104 = vmatpush1.xpose.msra.mxu0 0.0
        %1105 = vmatprep.subr.mxu0 0.0
        %1106 = vmatpush1.xpose.msra.mxu0 0.0
        %1107 = vmatprep.subr.mxu0 0.0
        %1108 = vmatpush1.xpose.msra.mxu0 0.0
        %1109 = vmatprep.subr.mxu0 0.0
        %1110 = vmatpush1.xpose.msra.mxu0 0.0
        %1111 = vmatprep.subr.mxu0 0.0
        %1112 = vmatpush1.xpose.msra.mxu0 0.0
        %1113 = vmatprep.subr.mxu0 0.0
        %1114 = vmatpush1.xpose.msra.mxu0 0.0
        %1115 = vmatprep.subr.mxu0 0.0
        %1116 = vmatpush1.xpose.msra.mxu0 0.0
        %1117 = vmatprep.subr.mxu0 0.0
        %1118 = vmatpush1.xpose.msra.mxu0 0.0
        %1119 = vmatprep.subr.mxu0 0.0
        %1120 = vmatpush1.xpose.msra.mxu0 0.0
        %1121 = vmatprep.subr.mxu0 0.0
        %1122 = vmatpush1.xpose.msra.mxu0 0.0
        %1123 = vmatprep.subr.mxu0 0.0
        %1124 = vmatpush1.xpose.msra.mxu0 0.0
        %1125 = vmatprep.subr.mxu0 0.0
        %1126 = vmatpush1.xpose.msra.mxu0 0.0
        %1127 = vmatprep.subr.mxu0 0.0
        %1128 = vmatpush1.xpose.msra.mxu0 0.0
        %1129 = vmatprep.subr.mxu0 0.0
        %1130 = vmatpush1.xpose.msra.mxu0 0.0
        %1131 = vmatprep.subr.mxu0 0.0
        %1132 = vmatpush1.xpose.msra.mxu0 0.0
        %1133 = vmatprep.subr.mxu0 0.0
        %1134 = vmatpush1.xpose.msra.mxu0 0.0
        %1135 = vmatprep.subr.mxu0 0.0
        %1136 = vmatpush1.xpose.msra.mxu0 0.0
        %1137 = vmatprep.subr.mxu0 0.0
        %1138 = vmatpush1.xpose.msra.mxu0 0.0
        %1139 = vmatprep.subr.mxu0 0.0
        %1140 = vmatpush1.xpose.msra.mxu0 0.0
        %1141 = vmatprep.subr.mxu0 0.0
        %1142 = vmatpush1.xpose.msra.mxu0 0.0
        %1143 = vmatprep.subr.mxu0 0.0
        %1144 = vmatpush1.xpose.msra.mxu0 0.0
        %1145 = vmatprep.subr.mxu0 0.0
        %1146 = vmatpush1.xpose.msra.mxu0 0.0
        %1147 = vmatprep.mubr.f32.mxu0 0.0
        %1148 = vmatmul.mubr.f32.gmra.mrb[0].mxu0 %v1079
        %v1149 = vpop.f32.mrb[0].mxu0
        %v1150 = vadd.f32 %v579, %v1149
        %v1151 = vpop.f32.mrb[0].mxu0
        %1152 = vdwg.mxu0
        %v1153 = vsel %vm583, %v1150, -inf
        %1154 = vmax.xlane.f32.xlu0 %v1153
        %v1155 = vpop.xlane.xlu0 %1154
        %v1156 = vsub.f32 %v1150, %v1155
        %v1157 = vmul.f32 %v1156, 1.442695
        %v1158 = vpow.pop %v1157
        %v1159 = vsel %vm583, %v1158, 0.0
        %1160 = vadd.xlane.f32.xlu0 %v1159
        %v1161 = vpop.xlane.xlu0 %1160
        %v1162 = vrcp.pop %v1161
        %v1163 = vmul.f32 %v1158, %v1162
        %1164 = vrot.lane.b32.xlu0 %v576, 40
        %v1165 = vpop.permute.xlu0 %1164
        %v1168 = vsel %vm583, %v1163, 0
        %1170 = vmatprep.subr.mxu0 0.0
        %1171 = vmatpush1.msra.mxu0 %v1165
        %1172 = vmatprep.subr.mxu0 0.0
        %1173 = vmatpush1.msra.mxu0 0.0
        %1174 = vmatprep.subr.mxu0 0.0
        %1175 = vmatpush1.msra.mxu0 0.0
        %1176 = vmatprep.subr.mxu0 0.0
        %1177 = vmatpush1.msra.mxu0 0.0
        %1178 = vmatprep.subr.mxu0 0.0
        %1179 = vmatpush1.msra.mxu0 0.0
        %1180 = vmatprep.subr.mxu0 0.0
        %1181 = vmatpush1.msra.mxu0 0.0
        %1182 = vmatprep.subr.mxu0 0.0
        %1183 = vmatpush1.msra.mxu0 0.0
        %1184 = vmatprep.subr.mxu0 0.0
        %1185 = vmatpush1.msra.mxu0 0.0
        %1186 = vmatprep.subr.mxu0 0.0
        %1187 = vmatpush1.msra.mxu0 0.0
        %1188 = vmatprep.subr.mxu0 0.0
        %1189 = vmatpush1.msra.mxu0 0.0
        %1190 = vmatprep.subr.mxu0 0.0
        %1191 = vmatpush1.msra.mxu0 0.0
        %1192 = vmatprep.subr.mxu0 0.0
        %1193 = vmatpush1.msra.mxu0 0.0
        %1194 = vmatprep.subr.mxu0 0.0
        %1195 = vmatpush1.msra.mxu0 0.0
        %1196 = vmatprep.subr.mxu0 0.0
        %1197 = vmatpush1.msra.mxu0 0.0
        %1198 = vmatprep.subr.mxu0 0.0
        %1199 = vmatpush1.msra.mxu0 0.0
        %1200 = vmatprep.subr.mxu0 0.0
        %1201 = vmatpush1.msra.mxu0 0.0
        %1202 = vmatprep.subr.mxu0 0.0
        %1203 = vmatpush1.msra.mxu0 0.0
        %1204 = vmatprep.subr.mxu0 0.0
        %1205 = vmatpush1.msra.mxu0 0.0
        %1206 = vmatprep.subr.mxu0 0.0
        %1207 = vmatpush1.msra.mxu0 0.0
        %1208 = vmatprep.subr.mxu0 0.0
        %1209 = vmatpush1.msra.mxu0 0.0
        %1210 = vmatprep.subr.mxu0 0.0
        %1211 = vmatpush1.msra.mxu0 0.0
        %1212 = vmatprep.subr.mxu0 0.0
        %1213 = vmatpush1.msra.mxu0 0.0
        %1214 = vmatprep.subr.mxu0 0.0
        %1215 = vmatpush1.msra.mxu0 0.0
        %1216 = vmatprep.subr.mxu0 0.0
        %1217 = vmatpush1.msra.mxu0 0.0
        %1218 = vmatprep.subr.mxu0 0.0
        %1219 = vmatpush1.msra.mxu0 0.0
        %1220 = vmatprep.subr.mxu0 0.0
        %1221 = vmatpush1.msra.mxu0 0.0
        %1222 = vmatprep.subr.mxu0 0.0
        %1223 = vmatpush1.msra.mxu0 0.0
        %1224 = vmatprep.subr.mxu0 0.0
        %1225 = vmatpush1.msra.mxu0 0.0
        %1226 = vmatprep.subr.mxu0 0.0
        %1227 = vmatpush1.msra.mxu0 0.0
        %1228 = vmatprep.subr.mxu0 0.0
        %1229 = vmatpush1.msra.mxu0 0.0
        %1230 = vmatprep.subr.mxu0 0.0
        %1231 = vmatpush1.msra.mxu0 0.0
        %1232 = vmatprep.subr.mxu0 0.0
        %1233 = vmatpush1.msra.mxu0 0.0
        %1234 = vmatprep.mubr.f32.mxu0 0.0
        %1235 = vmatmul.mubr.f32.gmra.mrb[0].mxu0 %v1168
        %v1236 = vpop.f32.mrb[0].mxu0
        %v1237 = vadd.f32 0.0, %v1236
        %v1238 = vpop.f32.mrb[0].mxu0
        %1239 = vdwg.mxu0
        %1241 = vrot.lane.b32.xlu0 %v907, 8
        %v1242 = vpop.permute.xlu0 %1241
        %1245 = vrot.lane.b32.xlu0 %v1072, 16
        %v1246 = vpop.permute.xlu0 %1245
        %1249 = vrot.lane.b32.xlu0 %v1237, 24
        %v1250 = vpop.permute.xlu0 %1249
        %v1252 = vsel %vm583, %v742, %v1242
        %vm1253 = vcmask 130048
        %v1254 = vsel %vm1253, %v1252, %v1246
        %vm1255 = vcmask 195584
        %v1256 = vsel %vm1255, %v1254, %v1250
        %v1257 = vld [vmem:[%s6] sm:$0xff]
        %v1258 = vld [vmem:[%s6 + $0x8] sm:$0xff]
        %v1259 = vld [vmem:[%s6 + $0x10] sm:$0xff]
        %v1260 = vld [vmem:[%s6 + $0x18] sm:$0xff]
        %v1261 = vld [vmem:[%s7] sm:$0x1]
        %v1263 = vlaneseq
        %v1264 = vshrl.u32 %v1263, 7
        %v1265 = vsub.s32 0, %v1264
        %v1266 = vrot.slane %v1261, %v1265
        %v1269 = vsel %vm466, %v1256, 0
        %1271 = vmatprep.subr.mxu0 0.0
        %1272 = vmatpush1.msra.mxu0 %v1257
        %1273 = vmatprep.subr.mxu0 0.0
        %1274 = vmatpush1.msra.mxu0 %v1258
        %1275 = vmatprep.subr.mxu0 0.0
        %1276 = vmatpush1.msra.mxu0 %v1259
        %1277 = vmatprep.subr.mxu0 0.0
        %1278 = vmatpush1.msra.mxu0 %v1260
        %1279 = vmatprep.subr.mxu0 0.0
        %1280 = vmatpush1.msra.mxu0 0.0
        %1281 = vmatprep.subr.mxu0 0.0
        %1282 = vmatpush1.msra.mxu0 0.0
        %1283 = vmatprep.subr.mxu0 0.0
        %1284 = vmatpush1.msra.mxu0 0.0
        %1285 = vmatprep.subr.mxu0 0.0
        %1286 = vmatpush1.msra.mxu0 0.0
        %1287 = vmatprep.subr.mxu0 0.0
        %1288 = vmatpush1.msra.mxu0 0.0
        %1289 = vmatprep.subr.mxu0 0.0
        %1290 = vmatpush1.msra.mxu0 0.0
        %1291 = vmatprep.subr.mxu0 0.0
        %1292 = vmatpush1.msra.mxu0 0.0
        %1293 = vmatprep.subr.mxu0 0.0
        %1294 = vmatpush1.msra.mxu0 0.0
        %1295 = vmatprep.subr.mxu0 0.0
        %1296 = vmatpush1.msra.mxu0 0.0
        %1297 = vmatprep.subr.mxu0 0.0
        %1298 = vmatpush1.msra.mxu0 0.0
        %1299 = vmatprep.subr.mxu0 0.0
        %1300 = vmatpush1.msra.mxu0 0.0
        %1301 = vmatprep.subr.mxu0 0.0
        %1302 = vmatpush1.msra.mxu0 0.0
        %1303 = vmatprep.subr.mxu0 0.0
        %1304 = vmatpush1.msra.mxu0 0.0
        %1305 = vmatprep.subr.mxu0 0.0
        %1306 = vmatpush1.msra.mxu0 0.0
        %1307 = vmatprep.subr.mxu0 0.0
        %1308 = vmatpush1.msra.mxu0 0.0
        %1309 = vmatprep.subr.mxu0 0.0
        %1310 = vmatpush1.msra.mxu0 0.0
        %1311 = vmatprep.subr.mxu0 0.0
        %1312 = vmatpush1.msra.mxu0 0.0
        %1313 = vmatprep.subr.mxu0 0.0
        %1314 = vmatpush1.msra.mxu0 0.0
        %1315 = vmatprep.subr.mxu0 0.0
        %1316 = vmatpush1.msra.mxu0 0.0
        %1317 = vmatprep.subr.mxu0 0.0
        %1318 = vmatpush1.msra.mxu0 0.0
        %1319 = vmatprep.subr.mxu0 0.0
        %1320 = vmatpush1.msra.mxu0 0.0
        %1321 = vmatprep.subr.mxu0 0.0
        %1322 = vmatpush1.msra.mxu0 0.0
        %1323 = vmatprep.subr.mxu0 0.0
        %1324 = vmatpush1.msra.mxu0 0.0
        %1325 = vmatprep.subr.mxu0 0.0
        %1326 = vmatpush1.msra.mxu0 0.0
        %1327 = vmatprep.subr.mxu0 0.0
        %1328 = vmatpush1.msra.mxu0 0.0
        %1329 = vmatprep.subr.mxu0 0.0
        %1330 = vmatpush1.msra.mxu0 0.0
        %1331 = vmatprep.subr.mxu0 0.0
        %1332 = vmatpush1.msra.mxu0 0.0
        %1333 = vmatprep.subr.mxu0 0.0
        %1334 = vmatpush1.msra.mxu0 0.0
        %1335 = vmatprep.mubr.f32.mxu0 0.0
        %1336 = vmatmul.mubr.f32.gmra.mrb[0].mxu0 %v1269
        %v1337 = vpop.f32.mrb[0].mxu0
        %v1338 = vadd.f32 %v1266, %v1337
        %v1339 = vpop.f32.mrb[0].mxu0
        %1340 = vdwg.mxu0
        %v1341 = vadd.f32 %v463, %v1338
        %v1342 = vld [vmem:[%s8] sm:$0x1]
        %v1343 = vld [vmem:[%s9] sm:$0x1]
        %v1344 = vsel %vm466, %v1341, 0.0
        %1345 = vadd.xlane.f32.xlu0 %v1344
        %v1346 = vpop.xlane.xlu0 %1345
        %v1347 = vmul.f32 %v1346, %v470
        %v1348 = vsub.f32 %v1341, %v1347
        %v1349 = vmul.f32 %v1348, %v1348
        %v1350 = vsel %vm466, %v1349, 0.0
        %1351 = vadd.xlane.f32.xlu0 %v1350
        %v1352 = vpop.xlane.xlu0 %1351
        %v1353 = vmul.f32 %v1352, %v470
        %v1354 = vadd.f32 %v1353, 1e-05
        %v1355 = vrsqrt.pop %v1354
        %v1356 = vmul.f32 %v1348, %v1355
        %v1358 = vlaneseq
        %v1359 = vshrl.u32 %v1358, 7
        %v1360 = vsub.s32 0, %v1359
        %v1361 = vrot.slane %v1342, %v1360
        %v1363 = vmul.f32 %v1356, %v1361
        %v1365 = vlaneseq
        %v1366 = vshrl.u32 %v1365, 7
        %v1367 = vsub.s32 0, %v1366
        %v1368 = vrot.slane %v1343, %v1367
        %v1370 = vadd.f32 %v1363, %v1368
        %v1371 = vld [vmem:[%s10] sm:$0xff]
        %v1372 = vld [vmem:[%s10 + $0x8] sm:$0xff]
        %v1373 = vld [vmem:[%s10 + $0x10] sm:$0xff]
        %v1374 = vld [vmem:[%s10 + $0x18] sm:$0xff]
        %v1375 = vld [vmem:[%s11] sm:$0x1]
        %v1377 = vlaneseq
        %v1378 = vshrl.u32 %v1377, 7
        %v1379 = vsub.s32 0, %v1378
        %v1380 = vrot.slane %v1375, %v1379
        %v1383 = vsel %vm466, %v1370, 0
        %1385 = vmatprep.subr.mxu0 0.0
        %1386 = vmatpush1.msra.mxu0 %v1371
        %1387 = vmatprep.subr.mxu0 0.0
        %1388 = vmatpush1.msra.mxu0 %v1372
        %1389 = vmatprep.subr.mxu0 0.0
        %1390 = vmatpush1.msra.mxu0 %v1373
        %1391 = vmatprep.subr.mxu0 0.0
        %1392 = vmatpush1.msra.mxu0 %v1374
        %1393 = vmatprep.subr.mxu0 0.0
        %1394 = vmatpush1.msra.mxu0 0.0
        %1395 = vmatprep.subr.mxu0 0.0
        %1396 = vmatpush1.msra.mxu0 0.0
        %1397 = vmatprep.subr.mxu0 0.0
        %1398 = vmatpush1.msra.mxu0 0.0
        %1399 = vmatprep.subr.mxu0 0.0
        %1400 = vmatpush1.msra.mxu0 0.0
        %1401 = vmatprep.subr.mxu0 0.0
        %1402 = vmatpush1.msra.mxu0 0.0
        %1403 = vmatprep.subr.mxu0 0.0
        %1404 = vmatpush1.msra.mxu0 0.0
        %1405 = vmatprep.subr.mxu0 0.0
        %1406 = vmatpush1.msra.mxu0 0.0
        %1407 = vmatprep.subr.mxu0 0.0
        %1408 = vmatpush1.msra.mxu0 0.0
        %1409 = vmatprep.subr.mxu0 0.0
        %1410 = vmatpush1.msra.mxu0 0.0
        %1411 = vmatprep.subr.mxu0 0.0
        %1412 = vmatpush1.msra.mxu0 0.0
        %1413 = vmatprep.subr.mxu0 0.0
        %1414 = vmatpush1.msra.mxu0 0.0
        %1415 = vmatprep.subr.mxu0 0.0
        %1416 = vmatpush1.msra.mxu0 0.0
        %1417 = vmatprep.subr.mxu0 0.0
        %1418 = vmatpush1.msra.mxu0 0.0
        %1419 = vmatprep.subr.mxu0 0.0
        %1420 = vmatpush1.msra.mxu0 0.0
        %1421 = vmatprep.subr.mxu0 0.0
        %1422 = vmatpush1.msra.mxu0 0.0
        %1423 = vmatprep.subr.mxu0 0.0
        %1424 = vmatpush1.msra.mxu0 0.0
        %1425 = vmatprep.subr.mxu0 0.0
        %1426 = vmatpush1.msra.mxu0 0.0
        %1427 = vmatprep.subr.mxu0 0.0
        %1428 = vmatpush1.msra.mxu0 0.0
        %1429 = vmatprep.subr.mxu0 0.0
        %1430 = vmatpush1.msra.mxu0 0.0
        %1431 = vmatprep.subr.mxu0 0.0
        %1432 = vmatpush1.msra.mxu0 0.0
        %1433 = vmatprep.subr.mxu0 0.0
        %1434 = vmatpush1.msra.mxu0 0.0
        %1435 = vmatprep.subr.mxu0 0.0
        %1436 = vmatpush1.msra.mxu0 0.0
        %1437 = vmatprep.subr.mxu0 0.0
        %1438 = vmatpush1.msra.mxu0 0.0
        %1439 = vmatprep.subr.mxu0 0.0
        %1440 = vmatpush1.msra.mxu0 0.0
        %1441 = vmatprep.subr.mxu0 0.0
        %1442 = vmatpush1.msra.mxu0 0.0
        %1443 = vmatprep.subr.mxu0 0.0
        %1444 = vmatpush1.msra.mxu0 0.0
        %1445 = vmatprep.subr.mxu0 0.0
        %1446 = vmatpush1.msra.mxu0 0.0
        %1447 = vmatprep.subr.mxu0 0.0
        %1448 = vmatpush1.msra.mxu0 0.0
        %1449 = vmatprep.mubr.f32.mxu0 0.0
        %1450 = vmatmul.mubr.f32.gmra.mrb[0].mxu0 %v1383
        %v1451 = vpop.f32.mrb[0].mxu0
        %v1452 = vadd.f32 %v1380, %v1451
        %v1453 = vpop.f32.mrb[0].mxu0
        %1454 = vdwg.mxu0
        %v1455 = vmul.f32 %v1452, 0.5
        %v1456 = vmul.f32 %v1452, 0.044715
        %v1457 = vmul.f32 %v1456, %v1452
        %v1458 = vmul.f32 %v1457, %v1452
        %v1459 = vadd.f32 %v1452, %v1458
        %v1460 = vmul.f32 %v1459, 0.7978846
        %v1461 = vtanh.pop %v1460
        %v1462 = vadd.f32 %v1461, 1.0
        %v1463 = vmul.f32 %v1455, %v1462
        %v1464 = vld [vmem:[%s12] sm:$0xff]
        %v1465 = vld [vmem:[%s12 + $0x8] sm:$0xff]
        %v1466 = vld [vmem:[%s12 + $0x10] sm:$0xff]
        %v1467 = vld [vmem:[%s12 + $0x18] sm:$0xff]
        %v1468 = vld [vmem:[%s12 + $0x20] sm:$0xff]
        %v1469 = vld [vmem:[%s12 + $0x28] sm:$0xff]
        %v1470 = vld [vmem:[%s12 + $0x30] sm:$0xff]
        %v1471 = vld [vmem:[%s12 + $0x38] sm:$0xff]
        %v1472 = vld [vmem:[%s12 + $0x40] sm:$0xff]
        %v1473 = vld [vmem:[%s12 + $0x48] sm:$0xff]
        %v1474 = vld [vmem:[%s12 + $0x50] sm:$0xff]
        %v1475 = vld [vmem:[%s12 + $0x58] sm:$0xff]
        %v1476 = vld [vmem:[%s12 + $0x60] sm:$0xff]
        %v1477 = vld [vmem:[%s12 + $0x68] sm:$0xff]
        %v1478 = vld [vmem:[%s12 + $0x70] sm:$0xff]
        %v1479 = vld [vmem:[%s12 + $0x78] sm:$0xff]
        %v1480 = vld [vmem:[%s13] sm:$0x1]
        %v1482 = vlaneseq
        %v1483 = vshrl.u32 %v1482, 7
        %v1484 = vsub.s32 0, %v1483
        %v1485 = vrot.slane %v1480, %v1484
        %1487 = vmatprep.subr.mxu0 0.0
        %1488 = vmatpush1.msra.mxu0 %v1464
        %1489 = vmatprep.subr.mxu0 0.0
        %1490 = vmatpush1.msra.mxu0 %v1465
        %1491 = vmatprep.subr.mxu0 0.0
        %1492 = vmatpush1.msra.mxu0 %v1466
        %1493 = vmatprep.subr.mxu0 0.0
        %1494 = vmatpush1.msra.mxu0 %v1467
        %1495 = vmatprep.subr.mxu0 0.0
        %1496 = vmatpush1.msra.mxu0 %v1468
        %1497 = vmatprep.subr.mxu0 0.0
        %1498 = vmatpush1.msra.mxu0 %v1469
        %1499 = vmatprep.subr.mxu0 0.0
        %1500 = vmatpush1.msra.mxu0 %v1470
        %1501 = vmatprep.subr.mxu0 0.0
        %1502 = vmatpush1.msra.mxu0 %v1471
        %1503 = vmatprep.subr.mxu0 0.0
        %1504 = vmatpush1.msra.mxu0 %v1472
        %1505 = vmatprep.subr.mxu0 0.0
        %1506 = vmatpush1.msra.mxu0 %v1473
        %1507 = vmatprep.subr.mxu0 0.0
        %1508 = vmatpush1.msra.mxu0 %v1474
        %1509 = vmatprep.subr.mxu0 0.0
        %1510 = vmatpush1.msra.mxu0 %v1475
        %1511 = vmatprep.subr.mxu0 0.0
        %1512 = vmatpush1.msra.mxu0 %v1476
        %1513 = vmatprep.subr.mxu0 0.0
        %1514 = vmatpush1.msra.mxu0 %v1477
        %1515 = vmatprep.subr.mxu0 0.0
        %1516 = vmatpush1.msra.mxu0 %v1478
        %1517 = vmatprep.subr.mxu0 0.0
        %1518 = vmatpush1.msra.mxu0 %v1479
        %1519 = vmatprep.subr.mxu0 0.0
        %1520 = vmatpush1.msra.mxu0 0.0
        %1521 = vmatprep.subr.mxu0 0.0
        %1522 = vmatpush1.msra.mxu0 0.0
        %1523 = vmatprep.subr.mxu0 0.0
        %1524 = vmatpush1.msra.mxu0 0.0
        %1525 = vmatprep.subr.mxu0 0.0
        %1526 = vmatpush1.msra.mxu0 0.0
        %1527 = vmatprep.subr.mxu0 0.0
        %1528 = vmatpush1.msra.mxu0 0.0
        %1529 = vmatprep.subr.mxu0 0.0
        %1530 = vmatpush1.msra.mxu0 0.0
        %1531 = vmatprep.subr.mxu0 0.0
        %1532 = vmatpush1.msra.mxu0 0.0
        %1533 = vmatprep.subr.mxu0 0.0
        %1534 = vmatpush1.msra.mxu0 0.0
        %1535 = vmatprep.subr.mxu0 0.0
        %1536 = vmatpush1.msra.mxu0 0.0
        %1537 = vmatprep.subr.mxu0 0.0
        %1538 = vmatpush1.msra.mxu0 0.0
        %1539 = vmatprep.subr.mxu0 0.0
        %1540 = vmatpush1.msra.mxu0 0.0
        %1541 = vmatprep.subr.mxu0 0.0
        %1542 = vmatpush1.msra.mxu0 0.0
        %1543 = vmatprep.subr.mxu0 0.0
        %1544 = vmatpush1.msra.mxu0 0.0
        %1545 = vmatprep.subr.mxu0 0.0
        %1546 = vmatpush1.msra.mxu0 0.0
        %1547 = vmatprep.subr.mxu0 0.0
        %1548 = vmatpush1.msra.mxu0 0.0
        %1549 = vmatprep.subr.mxu0 0.0
        %1550 = vmatpush1.msra.mxu0 0.0
        %1551 = vmatprep.mubr.f32.mxu0 0.0
        %1552 = vmatmul.mubr.f32.gmra.mrb[0].mxu0 %v1463
        %v1553 = vpop.f32.mrb[0].mxu0
        %v1554 = vadd.f32 %v1485, %v1553
        %v1555 = vpop.f32.mrb[0].mxu0
        %1556 = vdwg.mxu0
        %v1557 = vadd.f32 %v1341, %v1554
        %1558 = vst.msk [vmem:[%s458] sm:$0xff] %vm466, %v1557
        %s1559 = sand.u32 %s335, 1
        %s1560 = scalar_lea.sflag [#allocation3], %s1559
        %s1561 = sand.u32 %s335, 1
        %s1562 = smul.addr %s1561, 8
        %s1563 = scalar_lea.vmem [#allocation2], %s1562
        // Predicated region
        $region77: #{tpu_custom_call.1} parent=75 // pred_check
          %p1564 = pneg %p345
        $region78: #{tpu_custom_call.1} parent=75 // pred_check_branch
          %1566 = sbr.rel (%p1564) target = $region80
        $region79: #{tpu_custom_call.1} parent=75 // pred_region
          %s1568 = ssub.s32 128, 128
          %1569 = vsyncadd %s1560, %s1568
          %s1570 = smul.addr %s28, 128
          %s1571 = scalar_lea.hbm %s14, %s1570
          %s1573 = sshll.u32 %s1563, 4
          %s1574 = int_to_ptr.vmem [resolvable:$true] %s1573
          %1576 = dma.vmem_to_hbm [thread:$0]  %s1574, 128, %s1571, %s1560
        $region80: #{tpu_custom_call.1} parent=75 // pred_fallthru
          _
      $region76: #{tpu_custom_call.1} parent=5 // pred_fallthru
        _
      %p1577 = scmp.le.s32.totalorder 2, %s23
      // Predicated region
      $region81: #{tpu_custom_call.1} parent=5 // pred_check
        %p1578 = pneg %p1577
      $region82: #{tpu_custom_call.1} parent=5 // pred_check_branch
        %1580 = sbr.rel (%p1578) target = $region84
      $region83: #{tpu_custom_call.1} parent=5 // pred_region
        %s1581 = ssub.s32 %s23, 2
        // Predicated region
        $region85: #{tpu_custom_call.1} parent=83 // pred_check
          %p1582 = pneg %p351
        $region86: #{tpu_custom_call.1} parent=83 // pred_check_branch
          %1584 = sbr.rel (%p1582) target = $region88
        $region87: #{tpu_custom_call.1} parent=83 // pred_region
          %s1585 = sand.u32 %s336, 1
          %s1586 = scalar_lea.sflag [#allocation3], %s1585
          %s1587 = sand.u32 %s336, 1
          %s1588 = smul.addr %s1587, 8
          %s1589 = scalar_lea.vmem [#allocation2], %s1588
          %1590 = dma.done %s1586, 128
        $region88: #{tpu_custom_call.1} parent=83 // pred_fallthru
          _
      $region84: #{tpu_custom_call.1} parent=5 // pred_fallthru
        _
    $region6: #{tpu_custom_call.1} parent=1 // loop_footer
      %s27 = sadd.s32 1, %s23
    $region7: #{tpu_custom_call.1} parent=1 // loop_footer_branch
      %22 = sbr.rel target = $region3
    $region8: #{tpu_custom_call.1} parent=1 // loop_exit
      _
    %1591 = vsyncpa [#allocation3], 1
    %s1592 = scalar_lea.sflag [#allocation3], 1
    %1593 = vsyncpa %s1592, 1

</llo_original>
